<compile_context>
chip_gen: v5e
topology: v5e:2x2
jax: 0.10.0
libtpu: 0.0.40
codegen_flags: <defaults>
</compile_context>

<pallas_src>
import jax
import jax.numpy as jnp
from jax.experimental import pallas as pl
from jax.experimental.pallas import tpu as pltpu

HIDDEN = 256
OUT_DIM = 3
OUT_PAD = 128            # lane-dense padded output width
TARGET_TB = 512          # batch-tile target (amortizes ~0.35 us/step overhead)


def actor_kernel(x_ref, w1_ref, w2_ref, w3_ref, wo_ref, b123_ref, bo_ref, o_ref):
    bf = jnp.bfloat16
    # In-kernel cast of the obs tile (free VPU filler under the MXU work).
    x = x_ref[...].astype(bf)
    # Layer 1: relu(x @ W1 + b1)   (bf16 MXU inputs, f32 accumulate/epilogue)
    h = jnp.dot(x, w1_ref[...], preferred_element_type=jnp.float32)
    h = jnp.maximum(h + b123_ref[0:1, :], 0.0)
    # Layer 2
    h = jnp.dot(h.astype(bf), w2_ref[...], preferred_element_type=jnp.float32)
    h = jnp.maximum(h + b123_ref[1:2, :], 0.0)
    # Layer 3
    h = jnp.dot(h.astype(bf), w3_ref[...], preferred_element_type=jnp.float32)
    h = jnp.maximum(h + b123_ref[2:3, :], 0.0)
    # Output layer: tanh(h @ Wo_pad + bo_pad)   (padded to 128 lanes, bf16 store)
    y = jnp.dot(h.astype(bf), wo_ref[...], preferred_element_type=jnp.float32)
    o_ref[...] = jnp.tanh(y + bo_ref[...]).astype(o_ref.dtype)


def prepare_params(params):
    """Pack f32 params into kernel-ready arrays (bf16 weights, merged biases,
    lane-padded output layer). Do this once, outside the hot loop."""
    bf = jnp.bfloat16
    w1 = params["w1"].astype(bf)
    w2 = params["w2"].astype(bf)
    w3 = params["w3"].astype(bf)
    wo = jnp.zeros((HIDDEN, OUT_PAD), bf).at[:, :OUT_DIM].set(
        params["wo"].astype(bf))
    b123 = jnp.concatenate(
        [params["b1"], params["b2"], params["b3"]], axis=0)      # (3, 256) f32
    bo = jnp.zeros((1, OUT_PAD), jnp.float32).at[:, :OUT_DIM].set(params["bo"])
    return w1, w2, w3, wo, b123, bo


def _choose_tile(batch, target_tb=TARGET_TB):
    """Large tiles to amortize per-grid-step overhead, but keep >= 2 grid
    steps when the batch allows it so the parallel axis feeds both v7x TCs."""
    half = -(-batch // 2)            # ceil(B / 2)
    half = -(-half // 8) * 8         # round up to sublane multiple of 8
    return min(target_tb, max(8, half))


def actor_forward(obs, params, *, tb=None):
    """obs: (B, D_obs) float32; params: dict of f32 weights/biases."""
    B, d_obs = obs.shape
    w1, w2, w3, wo, b123, bo = prepare_params(params)

    if tb is None:
        tb = _choose_tile(B)

    # Pad the batch up to a multiple of the tile (padded rows compute garbage
    # and are sliced off below). Obs stays f32 — the bf16 cast happens in-kernel.
    n_tiles = pl.cdiv(B, tb)
    b_pad = n_tiles * tb
    x = obs
    if b_pad != B:
        x = jnp.pad(x, ((0, b_pad - B), (0, 0)))

    # Weights/biases are VMEM-resident: constant block index every grid step.
    # (Left at the default buffer depth; ~0.7 MB total, negligible vs 16 MiB.)
    resident = lambda a: pl.BlockSpec(a.shape, lambda i: (0,) * a.ndim)

    out = pl.pallas_call(
        actor_kernel,
        out_shape=jax.ShapeDtypeStruct((b_pad, OUT_PAD), jnp.bfloat16),
        grid=(n_tiles,),
        in_specs=[
            pl.BlockSpec((tb, d_obs), lambda i: (i, 0)),   # obs tile (pipelined)
            resident(w1), resident(w2), resident(w3), resident(wo),
            resident(b123), resident(bo),
        ],
        out_specs=pl.BlockSpec((tb, OUT_PAD), lambda i: (i, 0)),
        compiler_params=pltpu.CompilerParams(
            dimension_semantics=("parallel",),
            vmem_limit_bytes=16 << 20,
        ),
    )(x, w1, w2, w3, wo, b123, bo)

    return out[:B, :OUT_DIM].astype(jnp.float32)


def init_params(key, obs_dim):
    """Deterministic init matching nn.Linear's U(-1/sqrt(fan_in), 1/sqrt(fan_in))."""
    ks = jax.random.split(key, 8)

    def linear(kw, kb, fan_in, fan_out):
        bound = 1.0 / jnp.sqrt(fan_in)
        w = jax.random.uniform(kw, (fan_in, fan_out), jnp.float32, -bound, bound)
        b = jax.random.uniform(kb, (1, fan_out), jnp.float32, -bound, bound)
        return w, b

    w1, b1 = linear(ks[0], ks[1], obs_dim, HIDDEN)
    w2, b2 = linear(ks[2], ks[3], HIDDEN, HIDDEN)
    w3, b3 = linear(ks[4], ks[5], HIDDEN, HIDDEN)
    wo, bo = linear(ks[6], ks[7], HIDDEN, OUT_DIM)
    return dict(w1=w1, b1=b1, w2=w2, b2=b2, w3=w3, b3=b3, wo=wo, bo=bo)


def actor_ref_f32(obs, p):
    h = jax.nn.relu(obs @ p["w1"] + p["b1"])
    h = jax.nn.relu(h @ p["w2"] + p["b2"])
    h = jax.nn.relu(h @ p["w3"] + p["b3"])
    return jnp.tanh(h @ p["wo"] + p["bo"])


def actor_ref_bf16(obs, p):
    """Reference mirroring the kernel's precision (bf16 matmul inputs, f32 acc)."""
    bf = jnp.bfloat16
    f32 = jnp.float32
    h = obs.astype(bf)
    h = jax.nn.relu(jnp.dot(h, p["w1"].astype(bf), preferred_element_type=f32) + p["b1"])
    h = jax.nn.relu(jnp.dot(h.astype(bf), p["w2"].astype(bf), preferred_element_type=f32) + p["b2"])
    h = jax.nn.relu(jnp.dot(h.astype(bf), p["w3"].astype(bf), preferred_element_type=f32) + p["b3"])
    return jnp.tanh(jnp.dot(h.astype(bf), p["wo"].astype(bf), preferred_element_type=f32) + p["bo"])


if __name__ == "__main__":
    key = jax.random.PRNGKey(0)
    k_obs, k_params = jax.random.split(key)

    # Batched enough to exercise >1 grid step (2 tiles of 128) while staying small.
    B, OBS_DIM = 256, 32
    obs = jax.random.normal(k_obs, (B, OBS_DIM), dtype=jnp.float32)
    params = init_params(k_params, OBS_DIM)

    out = actor_forward(obs, params)
    jax.block_until_ready(out)
    assert out.shape == (B, OUT_DIM), out.shape

    # Check against a precision-matched (bf16-matmul) reference; the kernel's
    # final bf16 store adds up to ~4e-3 rounding on a tanh output in [-1, 1].
    ref_bf = actor_ref_bf16(obs, params)
    assert jnp.allclose(out, ref_bf, atol=1e-2, rtol=1e-2), (
        f"max err vs bf16 ref {jnp.max(jnp.abs(out - ref_bf))}")
    # ...and loosely against the pure-f32 reference (bf16 cast deviation).
    ref_32 = actor_ref_f32(obs, params)
    assert jnp.max(jnp.abs(out - ref_32)) < 5e-2, (
        f"max err vs f32 ref {jnp.max(jnp.abs(out - ref_32))}")

    print("KERNEL_OK")
</pallas_src>

<mosaic_0001>
module attributes {stable_mosaic.version = 11 : i64} {
  func.func @actor_kernel(%arg0: i32, %arg1: memref<128x32xf32, #tpu.memory_space<vmem>>, %arg2: memref<32x256xbf16, #tpu.memory_space<vmem>>, %arg3: memref<256x256xbf16, #tpu.memory_space<vmem>>, %arg4: memref<256x256xbf16, #tpu.memory_space<vmem>>, %arg5: memref<256x128xbf16, #tpu.memory_space<vmem>>, %arg6: memref<3x256xf32, #tpu.memory_space<vmem>>, %arg7: memref<1x128xf32, #tpu.memory_space<vmem>>, %arg8: memref<128x128xbf16, #tpu.memory_space<vmem>>) attributes {dimension_semantics = [#tpu.dimension_semantics<parallel>], iteration_bounds = array<i64: 2>, scalar_prefetch = 0 : i64, scratch_operands = 0 : i64, tpu.core_type = #tpu.core_type<tc>, window_params = [{transform_indices = @transform_0, window_bounds = array<i64: 128, 32>}, {pipeline_mode = #tpu.pipeline_mode<synchronous>, transform_indices = @transform_1, window_bounds = array<i64: 32, 256>}, {pipeline_mode = #tpu.pipeline_mode<synchronous>, transform_indices = @transform_2, window_bounds = array<i64: 256, 256>}, {pipeline_mode = #tpu.pipeline_mode<synchronous>, transform_indices = @transform_3, window_bounds = array<i64: 256, 256>}, {pipeline_mode = #tpu.pipeline_mode<synchronous>, transform_indices = @transform_4, window_bounds = array<i64: 256, 128>}, {pipeline_mode = #tpu.pipeline_mode<synchronous>, transform_indices = @transform_5, window_bounds = array<i64: 3, 256>}, {pipeline_mode = #tpu.pipeline_mode<synchronous>, transform_indices = @transform_6, window_bounds = array<i64: 1, 128>}, {transform_indices = @transform_7, window_bounds = array<i64: 128, 128>}]} {
    %c0 = arith.constant 0 : index
    %c0_0 = arith.constant 0 : index
    %0 = vector.load %arg1[%c0, %c0_0] : memref<128x32xf32, #tpu.memory_space<vmem>>, vector<128x32xf32>
    %1 = arith.truncf %0 : vector<128x32xf32> to vector<128x32xbf16>
    %c0_1 = arith.constant 0 : index
    %c0_2 = arith.constant 0 : index
    %2 = vector.load %arg2[%c0_1, %c0_2] : memref<32x256xbf16, #tpu.memory_space<vmem>>, vector<32x256xbf16>
    %cst = arith.constant dense<0.000000e+00> : vector<128x256xf32>
    %3 = tpu.matmul %1, %2, %cst {dimension_numbers = #tpu.dot_dimension_numbers<[1], [0], [0], [1], [0, 0, 1, 1], [], []>} : vector<128x32xbf16>, vector<32x256xbf16>, vector<128x256xf32> -> vector<128x256xf32>
    %c0_3 = arith.constant 0 : index
    %c0_4 = arith.constant 0 : index
    %4 = vector.load %arg6[%c0_3, %c0_4] : memref<3x256xf32, #tpu.memory_space<vmem>>, vector<1x256xf32>
    %5 = vector.broadcast %4 : vector<1x256xf32> to vector<128x256xf32>
    %6 = arith.addf %3, %5 : vector<128x256xf32>
    %cst_5 = arith.constant 0.000000e+00 : f32
    %7 = vector.broadcast %cst_5 : f32 to vector<128x256xf32>
    %8 = arith.maximumf %6, %7 : vector<128x256xf32>
    %9 = arith.truncf %8 : vector<128x256xf32> to vector<128x256xbf16>
    %c0_6 = arith.constant 0 : index
    %c0_7 = arith.constant 0 : index
    %10 = vector.load %arg3[%c0_6, %c0_7] : memref<256x256xbf16, #tpu.memory_space<vmem>>, vector<256x256xbf16>
    %cst_8 = arith.constant dense<0.000000e+00> : vector<128x256xf32>
    %11 = tpu.matmul %9, %10, %cst_8 {dimension_numbers = #tpu.dot_dimension_numbers<[1], [0], [0], [1], [0, 0, 1, 1], [], []>} : vector<128x256xbf16>, vector<256x256xbf16>, vector<128x256xf32> -> vector<128x256xf32>
    %c1 = arith.constant 1 : index
    %c0_9 = arith.constant 0 : index
    %12 = vector.load %arg6[%c1, %c0_9] : memref<3x256xf32, #tpu.memory_space<vmem>>, vector<1x256xf32>
    %13 = vector.broadcast %12 : vector<1x256xf32> to vector<128x256xf32>
    %14 = arith.addf %11, %13 : vector<128x256xf32>
    %cst_10 = arith.constant 0.000000e+00 : f32
    %15 = vector.broadcast %cst_10 : f32 to vector<128x256xf32>
    %16 = arith.maximumf %14, %15 : vector<128x256xf32>
    %17 = arith.truncf %16 : vector<128x256xf32> to vector<128x256xbf16>
    %c0_11 = arith.constant 0 : index
    %c0_12 = arith.constant 0 : index
    %18 = vector.load %arg4[%c0_11, %c0_12] : memref<256x256xbf16, #tpu.memory_space<vmem>>, vector<256x256xbf16>
    %cst_13 = arith.constant dense<0.000000e+00> : vector<128x256xf32>
    %19 = tpu.matmul %17, %18, %cst_13 {dimension_numbers = #tpu.dot_dimension_numbers<[1], [0], [0], [1], [0, 0, 1, 1], [], []>} : vector<128x256xbf16>, vector<256x256xbf16>, vector<128x256xf32> -> vector<128x256xf32>
    %c2 = arith.constant 2 : index
    %c0_14 = arith.constant 0 : index
    %20 = vector.load %arg6[%c2, %c0_14] : memref<3x256xf32, #tpu.memory_space<vmem>>, vector<1x256xf32>
    %21 = vector.broadcast %20 : vector<1x256xf32> to vector<128x256xf32>
    %22 = arith.addf %19, %21 : vector<128x256xf32>
    %cst_15 = arith.constant 0.000000e+00 : f32
    %23 = vector.broadcast %cst_15 : f32 to vector<128x256xf32>
    %24 = arith.maximumf %22, %23 : vector<128x256xf32>
    %25 = arith.truncf %24 : vector<128x256xf32> to vector<128x256xbf16>
    %c0_16 = arith.constant 0 : index
    %c0_17 = arith.constant 0 : index
    %26 = vector.load %arg5[%c0_16, %c0_17] : memref<256x128xbf16, #tpu.memory_space<vmem>>, vector<256x128xbf16>
    %cst_18 = arith.constant dense<0.000000e+00> : vector<128x128xf32>
    %27 = tpu.matmul %25, %26, %cst_18 {dimension_numbers = #tpu.dot_dimension_numbers<[1], [0], [0], [1], [0, 0, 1, 1], [], []>} : vector<128x256xbf16>, vector<256x128xbf16>, vector<128x128xf32> -> vector<128x128xf32>
    %c0_19 = arith.constant 0 : index
    %c0_20 = arith.constant 0 : index
    %28 = vector.load %arg7[%c0_19, %c0_20] : memref<1x128xf32, #tpu.memory_space<vmem>>, vector<1x128xf32>
    %29 = vector.broadcast %28 : vector<1x128xf32> to vector<128x128xf32>
    %30 = arith.addf %27, %29 : vector<128x128xf32>
    %31 = math.tanh %30 : vector<128x128xf32>
    %32 = arith.truncf %31 : vector<128x128xf32> to vector<128x128xbf16>
    %c0_21 = arith.constant 0 : index
    %c0_22 = arith.constant 0 : index
    %33 = vector.load %arg8[%c0_21, %c0_22] : memref<128x128xbf16, #tpu.memory_space<vmem>>, vector<128x128xbf16>
    tpu.vector_store %arg8[%c0_21, %c0_22], %32 {strides = array<i32>} : memref<128x128xbf16, #tpu.memory_space<vmem>>, vector<128x128xbf16>,
    return
  }
  func.func @transform_0(%arg0: i32) -> (i32, i32) {
    %c0_i32 = arith.constant 0 : i32
    %c0_i32_0 = arith.constant 0 : i32
    return %arg0, %c0_i32 : i32, i32
  }
  func.func @transform_1(%arg0: i32) -> (i32, i32) {
    %c0_i32 = arith.constant 0 : i32
    %c0_i32_0 = arith.constant 0 : i32
    %c0_i32_1 = arith.constant 0 : i32
    return %c0_i32, %c0_i32_0 : i32, i32
  }
  func.func @transform_2(%arg0: i32) -> (i32, i32) {
    %c0_i32 = arith.constant 0 : i32
    %c0_i32_0 = arith.constant 0 : i32
    %c0_i32_1 = arith.constant 0 : i32
    return %c0_i32, %c0_i32_0 : i32, i32
  }
  func.func @transform_3(%arg0: i32) -> (i32, i32) {
    %c0_i32 = arith.constant 0 : i32
    %c0_i32_0 = arith.constant 0 : i32
    %c0_i32_1 = arith.constant 0 : i32
    return %c0_i32, %c0_i32_0 : i32, i32
  }
  func.func @transform_4(%arg0: i32) -> (i32, i32) {
    %c0_i32 = arith.constant 0 : i32
    %c0_i32_0 = arith.constant 0 : i32
    %c0_i32_1 = arith.constant 0 : i32
    return %c0_i32, %c0_i32_0 : i32, i32
  }
  func.func @transform_5(%arg0: i32) -> (i32, i32) {
    %c0_i32 = arith.constant 0 : i32
    %c0_i32_0 = arith.constant 0 : i32
    %c0_i32_1 = arith.constant 0 : i32
    return %c0_i32, %c0_i32_0 : i32, i32
  }
  func.func @transform_6(%arg0: i32) -> (i32, i32) {
    %c0_i32 = arith.constant 0 : i32
    %c0_i32_0 = arith.constant 0 : i32
    %c0_i32_1 = arith.constant 0 : i32
    return %c0_i32, %c0_i32_0 : i32, i32
  }
  func.func @transform_7(%arg0: i32) -> (i32, i32) {
    %c0_i32 = arith.constant 0 : i32
    %c0_i32_0 = arith.constant 0 : i32
    return %arg0, %c0_i32 : i32, i32
  }
}

</mosaic_0001>

<llo_original>
// kernel: tpu_custom_call.1
$region0: #{tpu_custom_call.1}
  #allocation0 [shape = 'u32[]', space=smem, size = 0x4, offset = 0x4, fixed_abs, tag = 'smem constant byte address 0x4 - core index']
  #allocation1 [shape = 'u32[72,128]{1,0:T(1,128)}', space=vmem, size = 0x9000, scoped, tag = 'internal scratch']
  %s0 = inlined_call_operand.vmem [shape: f32[256,32], index: 0, kind: input, shape index: {}]
  %s1 = inlined_call_operand.vmem [shape: bf16[32,256], index: 1, kind: input, shape index: {}]
  %s2 = inlined_call_operand.vmem [shape: bf16[256,256], index: 2, kind: input, shape index: {}]
  %s3 = inlined_call_operand.hbm [shape: bf16[256,256], index: 3, kind: input, shape index: {}]
  %s4 = inlined_call_operand.hbm [shape: bf16[256,128], index: 4, kind: input, shape index: {}]
  %s5 = inlined_call_operand.vmem [shape: f32[3,256], index: 5, kind: input, shape index: {}]
  %s6 = inlined_call_operand.vmem [shape: f32[1,128], index: 6, kind: input, shape index: {}]
  %s7 = inlined_call_operand.hbm [shape: bf16[256,128], index: 7, kind: output, shape index: {}]
  %s8 = sld [smem:[#allocation0]]
  $region69: #{tpu_custom_call.1} parent=0
    _
  %s10 = ssub.s32 1, %s8
  %s11 = scalar_select 0, %s10, %s8
  $region1: #{tpu_custom_call.1} parent=0
    #allocation2 [shape = 'u8[131072]{0}', space=vmem, size = 0x20000, scoped, tag = 'input window, operand 3, single buffered']
    #allocation3 [shape = 's32[2]{0}', space=sflag, size = 0x8, scoped, tag = 'scoped memory for tpu_custom_call.1']
    #allocation4 [shape = 's32[2]{0}', space=sflag, size = 0x8, scoped, tag = 'scoped memory for tpu_custom_call.1']
    #allocation5 [shape = 'u8[65536]{0}', space=vmem, size = 0x10000, scoped, tag = 'input window, operand 4, single buffered']
    #allocation6 [shape = 's32[1]{0}', space=sflag, size = 0x4, scoped, tag = 'scoped memory for tpu_custom_call.1']
    #allocation7 [shape = 'u8[65536]{0}', space=vmem, size = 0x10000, scoped, tag = 'output window, operand 0']
    %12 = vsyncpa [#allocation3], 0
    %13 = vsyncpa [#allocation6], 0
    %14 = vsyncpa [#allocation4], 0
    %s15 = scalar_lea.sflag [#allocation4], 1
    %16 = vsyncpa %s15, 0
    loop: start=0, step=1, limit=4
    $region2: #{tpu_custom_call.1} parent=1 // loop_pre_header
      _
    $region3: #{tpu_custom_call.1} parent=1 // loop_header
      %s18 = sphi 0, %s22
      %p19 = scmp.ge.s32.totalorder %s18, 4
      %s28 = sphi 0, %s30
      %s31 = sphi 0, %s28
      %s32 = sphi 0, %s31
      %s48 = sphi 0, %s32
      %s52 = sphi 0, %s52
      %s54 = sphi 0, %s52
      %s55 = sphi 0, %s54
      %s69 = sphi 0, %s55
      %s73 = sphi 0, %s73
      %s75 = sphi 0, %s73
      %s76 = sphi 0, %s75
      %s90 = sphi 0, %s76
      %s94 = sphi 0, %s94
      %s96 = sphi 0, %s94
      %s97 = sphi 0, %s96
      %s111 = sphi 0, %s97
      %s115 = sphi 0, %s115
      %s117 = sphi 0, %s115
      %s118 = sphi 0, %s117
      %s132 = sphi 0, %s118
      %s136 = sphi 0, %s136
      %s138 = sphi 0, %s136
      %s139 = sphi 0, %s138
      %s153 = sphi 0, %s139
      %s157 = sphi 0, %s157
      %s159 = sphi 0, %s157
      %s160 = sphi 0, %s159
      %s174 = sphi 0, %s160
      %s180 = sphi 0, %s182
      %s183 = sphi 0, %s180
      %s184 = sphi 0, %s183
      %s200 = sphi 0, %s184
    $region4: #{tpu_custom_call.1} parent=1 // loop_header_branch
      %21 = sbr.rel (%p19) target = $region8
    $region5: #{tpu_custom_call.1} parent=1 // loop_body
      %s23 = ssub.s32 %s18, 1
      %s24 = ssub.s32 %s18, 2
      %s25 = sadd.s32 %s18, 1
      %s26 = ssub.s32 %s18, %s25
      %p27 = scmp.eq.s32.totalorder %s26, 0
      %s29 = sadd.s32 %s28, 1
      %s30 = scalar_select %p27, %s28, %s29
      %p33 = pneg %p27
      %p34 = scmp.eq.s32.totalorder %s18, 1
      %p35 = por %p33, %p34
      %p36 = scmp.ne.s32.totalorder %s28, %s31
      %p37 = scmp.eq.s32.totalorder %s18, 0
      %p38 = por %p36, %p37
      %p39 = scmp.ne.s32.totalorder %s28, %s31
      %p40 = scmp.eq.s32.totalorder %s23, 1
      %p41 = por %p39, %p40
      %p42 = scmp.ne.s32.totalorder %s31, %s32
      %p43 = scmp.eq.s32.totalorder %s23, 0
      %p44 = por %p42, %p43
      %p45 = scmp.ne.s32.totalorder %s31, %s32
      %p46 = scmp.eq.s32.totalorder %s24, 1
      %p47 = por %p45, %p46
      %p49 = scmp.ne.s32.totalorder %s32, %s48
      %p50 = scmp.eq.s32.totalorder %s24, 0
      %p51 = por %p49, %p50
      %s53 = sadd.s32 %s52, 1
      %p56 = scmp.eq.s32.totalorder %s18, 1
      %p57 = scmp.ne.s32.totalorder %s52, %s54
      %p58 = scmp.eq.s32.totalorder %s18, 0
      %p59 = por %p57, %p58
      %p60 = scmp.ne.s32.totalorder %s52, %s54
      %p61 = scmp.eq.s32.totalorder %s23, 1
      %p62 = por %p60, %p61
      %p63 = scmp.ne.s32.totalorder %s54, %s55
      %p64 = scmp.eq.s32.totalorder %s23, 0
      %p65 = por %p63, %p64
      %p66 = scmp.ne.s32.totalorder %s54, %s55
      %p67 = scmp.eq.s32.totalorder %s24, 1
      %p68 = por %p66, %p67
      %p70 = scmp.ne.s32.totalorder %s55, %s69
      %p71 = scmp.eq.s32.totalorder %s24, 0
      %p72 = por %p70, %p71
      %s74 = sadd.s32 %s73, 1
      %p77 = scmp.eq.s32.totalorder %s18, 1
      %p78 = scmp.ne.s32.totalorder %s73, %s75
      %p79 = scmp.eq.s32.totalorder %s18, 0
      %p80 = por %p78, %p79
      %p81 = scmp.ne.s32.totalorder %s73, %s75
      %p82 = scmp.eq.s32.totalorder %s23, 1
      %p83 = por %p81, %p82
      %p84 = scmp.ne.s32.totalorder %s75, %s76
      %p85 = scmp.eq.s32.totalorder %s23, 0
      %p86 = por %p84, %p85
      %p87 = scmp.ne.s32.totalorder %s75, %s76
      %p88 = scmp.eq.s32.totalorder %s24, 1
      %p89 = por %p87, %p88
      %p91 = scmp.ne.s32.totalorder %s76, %s90
      %p92 = scmp.eq.s32.totalorder %s24, 0
      %p93 = por %p91, %p92
      %s95 = sadd.s32 %s94, 1
      %p98 = scmp.eq.s32.totalorder %s18, 1
      %p99 = scmp.ne.s32.totalorder %s94, %s96
      %p100 = scmp.eq.s32.totalorder %s18, 0
      %p101 = por %p99, %p100
      %p102 = scmp.ne.s32.totalorder %s94, %s96
      %p103 = scmp.eq.s32.totalorder %s23, 1
      %p104 = por %p102, %p103
      %p105 = scmp.ne.s32.totalorder %s96, %s97
      %p106 = scmp.eq.s32.totalorder %s23, 0
      %p107 = por %p105, %p106
      %p108 = scmp.ne.s32.totalorder %s96, %s97
      %p109 = scmp.eq.s32.totalorder %s24, 1
      %p110 = por %p108, %p109
      %p112 = scmp.ne.s32.totalorder %s97, %s111
      %p113 = scmp.eq.s32.totalorder %s24, 0
      %p114 = por %p112, %p113
      %s116 = sadd.s32 %s115, 1
      %p119 = scmp.eq.s32.totalorder %s18, 1
      %p120 = scmp.ne.s32.totalorder %s115, %s117
      %p121 = scmp.eq.s32.totalorder %s18, 0
      %p122 = por %p120, %p121
      %p123 = scmp.ne.s32.totalorder %s115, %s117
      %p124 = scmp.eq.s32.totalorder %s23, 1
      %p125 = por %p123, %p124
      %p126 = scmp.ne.s32.totalorder %s117, %s118
      %p127 = scmp.eq.s32.totalorder %s23, 0
      %p128 = por %p126, %p127
      %p129 = scmp.ne.s32.totalorder %s117, %s118
      %p130 = scmp.eq.s32.totalorder %s24, 1
      %p131 = por %p129, %p130
      %p133 = scmp.ne.s32.totalorder %s118, %s132
      %p134 = scmp.eq.s32.totalorder %s24, 0
      %p135 = por %p133, %p134
      %s137 = sadd.s32 %s136, 1
      %p140 = scmp.eq.s32.totalorder %s18, 1
      %p141 = scmp.ne.s32.totalorder %s136, %s138
      %p142 = scmp.eq.s32.totalorder %s18, 0
      %p143 = por %p141, %p142
      %p144 = scmp.ne.s32.totalorder %s136, %s138
      %p145 = scmp.eq.s32.totalorder %s23, 1
      %p146 = por %p144, %p145
      %p147 = scmp.ne.s32.totalorder %s138, %s139
      %p148 = scmp.eq.s32.totalorder %s23, 0
      %p149 = por %p147, %p148
      %p150 = scmp.ne.s32.totalorder %s138, %s139
      %p151 = scmp.eq.s32.totalorder %s24, 1
      %p152 = por %p150, %p151
      %p154 = scmp.ne.s32.totalorder %s139, %s153
      %p155 = scmp.eq.s32.totalorder %s24, 0
      %p156 = por %p154, %p155
      %s158 = sadd.s32 %s157, 1
      %p161 = scmp.eq.s32.totalorder %s18, 1
      %p162 = scmp.ne.s32.totalorder %s157, %s159
      %p163 = scmp.eq.s32.totalorder %s18, 0
      %p164 = por %p162, %p163
      %p165 = scmp.ne.s32.totalorder %s157, %s159
      %p166 = scmp.eq.s32.totalorder %s23, 1
      %p167 = por %p165, %p166
      %p168 = scmp.ne.s32.totalorder %s159, %s160
      %p169 = scmp.eq.s32.totalorder %s23, 0
      %p170 = por %p168, %p169
      %p171 = scmp.ne.s32.totalorder %s159, %s160
      %p172 = scmp.eq.s32.totalorder %s24, 1
      %p173 = por %p171, %p172
      %p175 = scmp.ne.s32.totalorder %s160, %s174
      %p176 = scmp.eq.s32.totalorder %s24, 0
      %p177 = por %p175, %p176
      %s178 = ssub.s32 %s18, %s25
      %p179 = scmp.eq.s32.totalorder %s178, 0
      %s181 = sadd.s32 %s180, 1
      %s182 = scalar_select %p179, %s180, %s181
      %p185 = pneg %p179
      %p186 = scmp.eq.s32.totalorder %s18, 1
      %p187 = por %p185, %p186
      %p188 = scmp.ne.s32.totalorder %s180, %s183
      %p189 = scmp.eq.s32.totalorder %s18, 0
      %p190 = por %p188, %p189
      %p191 = scmp.ne.s32.totalorder %s180, %s183
      %p192 = scmp.eq.s32.totalorder %s23, 1
      %p193 = por %p191, %p192
      %p194 = scmp.ne.s32.totalorder %s183, %s184
      %p195 = scmp.eq.s32.totalorder %s23, 0
      %p196 = por %p194, %p195
      %p197 = scmp.ne.s32.totalorder %s183, %s184
      %p198 = scmp.eq.s32.totalorder %s24, 1
      %p199 = por %p197, %p198
      %p201 = scmp.ne.s32.totalorder %s184, %s200
      %p202 = scmp.eq.s32.totalorder %s24, 0
      %p203 = por %p201, %p202
      %p204 = scmp.le.s32.totalorder 1, %s18
      %p205 = scmp.lt.s32.totalorder %s18, 3
      %p206 = pnand %p204, %p205
      %p207 = pneg %p206
      // Predicated region
      $region9: #{tpu_custom_call.1} parent=5 // pred_check
        _
      $region10: #{tpu_custom_call.1} parent=5 // pred_check_branch
        %209 = sbr.rel (%p206) target = $region12
      $region11: #{tpu_custom_call.1} parent=5 // pred_region
        %s210 = ssub.s32 %s18, 1
        // Predicated region
        $region13: #{tpu_custom_call.1} parent=11 // pred_check
          %p211 = pneg %p65
        $region14: #{tpu_custom_call.1} parent=11 // pred_check_branch
          %213 = sbr.rel (%p211) target = $region16
        $region15: #{tpu_custom_call.1} parent=11 // pred_region
          _
        $region16: #{tpu_custom_call.1} parent=11 // pred_fallthru
          _
        // Predicated region
        $region17: #{tpu_custom_call.1} parent=11 // pred_check
          %p214 = pneg %p86
        $region18: #{tpu_custom_call.1} parent=11 // pred_check_branch
          %216 = sbr.rel (%p214) target = $region20
        $region19: #{tpu_custom_call.1} parent=11 // pred_region
          _
        $region20: #{tpu_custom_call.1} parent=11 // pred_fallthru
          _
        // Predicated region
        $region21: #{tpu_custom_call.1} parent=11 // pred_check
          %p217 = pneg %p107
        $region22: #{tpu_custom_call.1} parent=11 // pred_check_branch
          %219 = sbr.rel (%p217) target = $region24
        $region23: #{tpu_custom_call.1} parent=11 // pred_region
          %221 = vsyncadd [#allocation3], 0
          %s222 = sshll.u32 %s3, 4
          %s223 = int_to_ptr.hbm [resolvable:$true] %s222
          %s224 = sshll.u32 [#allocation2], 4
          %s225 = int_to_ptr.vmem [resolvable:$true] %s224
          %230 = dma.hbm_to_vmem [thread:$0]  %s223, 4096, %s225, [#allocation3], 128, 128, 8
        $region24: #{tpu_custom_call.1} parent=11 // pred_fallthru
          _
        // Predicated region
        $region25: #{tpu_custom_call.1} parent=11 // pred_check
          %p231 = pneg %p128
        $region26: #{tpu_custom_call.1} parent=11 // pred_check_branch
          %233 = sbr.rel (%p231) target = $region28
        $region27: #{tpu_custom_call.1} parent=11 // pred_region
          %235 = vsyncadd [#allocation6], 0
          %s236 = sshll.u32 %s4, 4
          %s237 = int_to_ptr.hbm [resolvable:$true] %s236
          %s238 = sshll.u32 [#allocation5], 4
          %s239 = int_to_ptr.vmem [resolvable:$true] %s238
          %244 = dma.hbm_to_vmem [thread:$0]  %s237, 2048, %s239, [#allocation6], 64, 64, 4
        $region28: #{tpu_custom_call.1} parent=11 // pred_fallthru
          _
        // Predicated region
        $region29: #{tpu_custom_call.1} parent=11 // pred_check
          %p245 = pneg %p149
        $region30: #{tpu_custom_call.1} parent=11 // pred_check_branch
          %247 = sbr.rel (%p245) target = $region32
        $region31: #{tpu_custom_call.1} parent=11 // pred_region
          _
        $region32: #{tpu_custom_call.1} parent=11 // pred_fallthru
          _
        // Predicated region
        $region33: #{tpu_custom_call.1} parent=11 // pred_check
          %p248 = pneg %p170
        $region34: #{tpu_custom_call.1} parent=11 // pred_check_branch
          %250 = sbr.rel (%p248) target = $region36
        $region35: #{tpu_custom_call.1} parent=11 // pred_region
          _
        $region36: #{tpu_custom_call.1} parent=11 // pred_fallthru
          _
      $region12: #{tpu_custom_call.1} parent=5 // pred_fallthru
        _
      %p251 = scmp.lt.s32.totalorder %s18, 2
      // Predicated region
      $region37: #{tpu_custom_call.1} parent=5 // pred_check
        %p252 = pneg %p251
      $region38: #{tpu_custom_call.1} parent=5 // pred_check_branch
        %254 = sbr.rel (%p252) target = $region40
      $region39: #{tpu_custom_call.1} parent=5 // pred_region
        // Predicated region
        $region41: #{tpu_custom_call.1} parent=39 // pred_check
          %p255 = pneg %p38
        $region42: #{tpu_custom_call.1} parent=39 // pred_check_branch
          %257 = sbr.rel (%p255) target = $region44
        $region43: #{tpu_custom_call.1} parent=39 // pred_region
          %s258 = smul.u32 16, %s18
          %p259 = scmp.lt.s32.totalorder %s258, 31
          %s260 = scalar_select %p259, %s258, 31
          %s261 = smul.addr %s260, 8
          %s262 = scalar_lea.vmem %s0, %s261
          %s263 = smul.u32 16, %s18
        $region44: #{tpu_custom_call.1} parent=39 // pred_fallthru
          _
      $region40: #{tpu_custom_call.1} parent=5 // pred_fallthru
        _
      %p264 = scmp.le.s32.totalorder 1, %s18
      %p265 = scmp.lt.s32.totalorder %s18, 3
      %p266 = pnand %p264, %p265
      %p267 = pneg %p266
      // Predicated region
      $region45: #{tpu_custom_call.1} parent=5 // pred_check
        _
      $region46: #{tpu_custom_call.1} parent=5 // pred_check_branch
        %269 = sbr.rel (%p266) target = $region48
      $region47: #{tpu_custom_call.1} parent=5 // pred_region
        %s270 = ssub.s32 %s18, 1
        // Predicated region
        $region49: #{tpu_custom_call.1} parent=47 // pred_check
          %p271 = pneg %p107
        $region50: #{tpu_custom_call.1} parent=47 // pred_check_branch
          %273 = sbr.rel (%p271) target = $region52
        $region51: #{tpu_custom_call.1} parent=47 // pred_region
          %275 = dma.done [#allocation3], 4096
        $region52: #{tpu_custom_call.1} parent=47 // pred_fallthru
          _
        // Predicated region
        $region53: #{tpu_custom_call.1} parent=47 // pred_check
          %p276 = pneg %p128
        $region54: #{tpu_custom_call.1} parent=47 // pred_check_branch
          %278 = sbr.rel (%p276) target = $region56
        $region55: #{tpu_custom_call.1} parent=47 // pred_region
          %280 = dma.done [#allocation6], 2048
        $region56: #{tpu_custom_call.1} parent=47 // pred_fallthru
          _
        %s281 = smul.u32 16, %s23
        %p282 = scmp.lt.s32.totalorder %s281, 31
        %s283 = scalar_select %p282, %s281, 31
        %s284 = smul.addr %s283, 8
        %s285 = scalar_lea.vmem %s0, %s284
        %p286 = pneg %p44
        %p287 = pneg %p41
        %p288 = pneg %p65
        %p289 = pneg %p62
        %p290 = pneg %p86
        %p291 = pneg %p83
        %p292 = pneg %p107
        %p293 = pneg %p104
        %p294 = pneg %p128
        %p295 = pneg %p125
        %p296 = pneg %p149
        %p297 = pneg %p146
        %p298 = pneg %p170
        %p299 = pneg %p167
        %p300 = pneg %p196
        %p301 = pneg %p193
        %s302 = sand.u32 %s183, 1
        %s303 = scalar_lea.sflag [#allocation4], %s302
        %s304 = sand.u32 %s183, 1
        %s305 = smul.addr %s304, 64
        %s306 = scalar_lea.vmem [#allocation7], %s305
        %s307 = smul.u32 16, %s23
        %p308 = scmp.lt.s32.totalorder %s307, 31
        %s309 = scalar_select %p308, %s307, 31
        %s310 = smul.addr %s309, 8
        %s311 = scalar_lea.vmem %s0, %s310
        %s312 = smul.u32 16, %s23
        %s313 = smul.u32 16, %s23
        %v315 = vld [vmem:[%s311] sm:$0xff]
        %v316 = vld [vmem:[%s311 + $0x8] sm:$0xff]
        %v317 = vld [vmem:[%s311 + $0x10] sm:$0xff]
        %v318 = vld [vmem:[%s311 + $0x18] sm:$0xff]
        %v319 = vld [vmem:[%s311 + $0x20] sm:$0xff]
        %v320 = vld [vmem:[%s311 + $0x28] sm:$0xff]
        %v321 = vld [vmem:[%s311 + $0x30] sm:$0xff]
        %v322 = vld [vmem:[%s311 + $0x38] sm:$0xff]
        %v323 = vld [vmem:[%s311 + $0x40] sm:$0xff]
        %v324 = vld [vmem:[%s311 + $0x48] sm:$0xff]
        %v325 = vld [vmem:[%s311 + $0x50] sm:$0xff]
        %v326 = vld [vmem:[%s311 + $0x58] sm:$0xff]
        %v327 = vld [vmem:[%s311 + $0x60] sm:$0xff]
        %v328 = vld [vmem:[%s311 + $0x68] sm:$0xff]
        %v329 = vld [vmem:[%s311 + $0x70] sm:$0xff]
        %v330 = vld [vmem:[%s311 + $0x78] sm:$0xff]
        %v331 = vpack.c.bf16 %v316, %v315
        %v332 = vpack.c.bf16 %v318, %v317
        %v333 = vpack.c.bf16 %v320, %v319
        %v334 = vpack.c.bf16 %v322, %v321
        %v335 = vpack.c.bf16 %v324, %v323
        %v336 = vpack.c.bf16 %v326, %v325
        %v337 = vpack.c.bf16 %v328, %v327
        %v338 = vpack.c.bf16 %v330, %v329
        %v339 = vld [vmem:[%s1] sm:$0xff]
        %v340 = vld [vmem:[%s1 + $0x8] sm:$0xff]
        %v341 = vld [vmem:[%s1 + $0x10] sm:$0xff]
        %v342 = vld [vmem:[%s1 + $0x18] sm:$0xff]
        %v343 = vld [vmem:[%s5] ss:$4 sm:$0x3]
        %v345 = vperm.slane %v343, 0
        %v346 = vperm.slane %v343, 1
        %v353 = vunpack.c.l.b16 %v339
        %v354 = vunpack.c.h.b16 %v339
        %v355 = vunpack.c.l.b16 %v340
        %v356 = vunpack.c.h.b16 %v340
        %v357 = vunpack.c.l.b16 %v341
        %v358 = vunpack.c.h.b16 %v341
        %v359 = vunpack.c.l.b16 %v342
        %v360 = vunpack.c.h.b16 %v342
        %v361 = vpack.c.b16 %v355, %v353
        %v362 = vpack.c.b16 %v356, %v354
        %v363 = vpack.c.b16 %v359, %v357
        %v364 = vpack.c.b16 %v360, %v358
        %vm369 = vcmask 261120
        %v371 = vsel %vm369, %v331, 0
        %v374 = vsel %vm369, %v332, 0
        %v377 = vsel %vm369, %v333, 0
        %v380 = vsel %vm369, %v334, 0
        %v383 = vsel %vm369, %v335, 0
        %v386 = vsel %vm369, %v336, 0
        %v389 = vsel %vm369, %v337, 0
        %v392 = vsel %vm369, %v338, 0
        %394 = vmatpush.bf16.msra.mxu0 0
        %395 = vmatpush.bf16.msra.mxu0 0
        %396 = vmatpush.bf16.msra.mxu0 0
        %397 = vmatpush.bf16.msra.mxu0 0
        %398 = vmatpush.bf16.msra.mxu0 0
        %399 = vmatpush.bf16.msra.mxu0 0
        %400 = vmatpush.bf16.msra.mxu0 %v363
        %401 = vmatpush.bf16.msra.mxu0 %v361
        %402 = vmatmul.bf16.gmra.mxu0 %v371
        %v403 = vpop.f32.mrf.mxu0
        %v404 = vadd.f32 %v345, %v403
        %v405 = vpop.f32.mrf.mxu0
        %v406 = vadd.f32 %v345, %v405
        %407 = vmatmul.bf16.gmra.mxu0 %v374
        %v408 = vpop.f32.mrf.mxu0
        %v409 = vadd.f32 %v345, %v408
        %v410 = vpop.f32.mrf.mxu0
        %v411 = vadd.f32 %v345, %v410
        %412 = vmatmul.bf16.gmra.mxu0 %v377
        %v413 = vpop.f32.mrf.mxu0
        %v414 = vadd.f32 %v345, %v413
        %v415 = vpop.f32.mrf.mxu0
        %v416 = vadd.f32 %v345, %v415
        %417 = vmatmul.bf16.gmra.mxu0 %v380
        %v418 = vpop.f32.mrf.mxu0
        %v419 = vadd.f32 %v345, %v418
        %v420 = vpop.f32.mrf.mxu0
        %v421 = vadd.f32 %v345, %v420
        %422 = vmatmul.bf16.gmra.mxu0 %v383
        %v423 = vpop.f32.mrf.mxu0
        %v424 = vadd.f32 %v345, %v423
        %v425 = vpop.f32.mrf.mxu0
        %v426 = vadd.f32 %v345, %v425
        %427 = vmatmul.bf16.gmra.mxu0 %v386
        %v428 = vpop.f32.mrf.mxu0
        %v429 = vadd.f32 %v345, %v428
        %v430 = vpop.f32.mrf.mxu0
        %v431 = vadd.f32 %v345, %v430
        %432 = vmatmul.bf16.gmra.mxu0 %v389
        %v433 = vpop.f32.mrf.mxu0
        %v434 = vadd.f32 %v345, %v433
        %v435 = vpop.f32.mrf.mxu0
        %v436 = vadd.f32 %v345, %v435
        %437 = vmatmul.bf16.gmra.mxu0 %v392
        %v438 = vpop.f32.mrf.mxu0
        %v439 = vadd.f32 %v345, %v438
        %v440 = vpop.f32.mrf.mxu0
        %v441 = vadd.f32 %v345, %v440
        %442 = vdwg.mxu0
        %443 = vmatpush.bf16.msra.mxu0 0
        %444 = vmatpush.bf16.msra.mxu0 0
        %445 = vmatpush.bf16.msra.mxu0 0
        %446 = vmatpush.bf16.msra.mxu0 0
        %447 = vmatpush.bf16.msra.mxu0 0
        %448 = vmatpush.bf16.msra.mxu0 0
        %449 = vmatpush.bf16.msra.mxu0 %v364
        %450 = vmatpush.bf16.msra.mxu0 %v362
        %451 = vmatmul.bf16.gmra.mxu0 %v371
        %v452 = vpop.f32.mrf.mxu0
        %v453 = vadd.f32 %v346, %v452
        %v454 = vpop.f32.mrf.mxu0
        %v455 = vadd.f32 %v346, %v454
        %456 = vmatmul.bf16.gmra.mxu0 %v374
        %v457 = vpop.f32.mrf.mxu0
        %v458 = vadd.f32 %v346, %v457
        %v459 = vpop.f32.mrf.mxu0
        %v460 = vadd.f32 %v346, %v459
        %461 = vmatmul.bf16.gmra.mxu0 %v377
        %v462 = vpop.f32.mrf.mxu0
        %v463 = vadd.f32 %v346, %v462
        %v464 = vpop.f32.mrf.mxu0
        %v465 = vadd.f32 %v346, %v464
        %466 = vmatmul.bf16.gmra.mxu0 %v380
        %v467 = vpop.f32.mrf.mxu0
        %v468 = vadd.f32 %v346, %v467
        %v469 = vpop.f32.mrf.mxu0
        %v470 = vadd.f32 %v346, %v469
        %471 = vmatmul.bf16.gmra.mxu0 %v383
        %v472 = vpop.f32.mrf.mxu0
        %v473 = vadd.f32 %v346, %v472
        %v474 = vpop.f32.mrf.mxu0
        %v475 = vadd.f32 %v346, %v474
        %476 = vmatmul.bf16.gmra.mxu0 %v386
        %v477 = vpop.f32.mrf.mxu0
        %v478 = vadd.f32 %v346, %v477
        %v479 = vpop.f32.mrf.mxu0
        %v480 = vadd.f32 %v346, %v479
        %481 = vmatmul.bf16.gmra.mxu0 %v389
        %v482 = vpop.f32.mrf.mxu0
        %v483 = vadd.f32 %v346, %v482
        %v484 = vpop.f32.mrf.mxu0
        %v485 = vadd.f32 %v346, %v484
        %486 = vmatmul.bf16.gmra.mxu0 %v392
        %v487 = vpop.f32.mrf.mxu0
        %v488 = vadd.f32 %v346, %v487
        %v489 = vpop.f32.mrf.mxu0
        %v490 = vadd.f32 %v346, %v489
        %491 = vdwg.mxu0
        %v492 = vmax.f32 %v404, 0.0
        %v493 = vmax.f32 %v453, 0.0
        %v494 = vmax.f32 %v406, 0.0
        %v495 = vmax.f32 %v455, 0.0
        %v496 = vmax.f32 %v409, 0.0
        %v497 = vmax.f32 %v458, 0.0
        %v498 = vmax.f32 %v411, 0.0
        %v499 = vmax.f32 %v460, 0.0
        %v500 = vmax.f32 %v414, 0.0
        %v501 = vmax.f32 %v463, 0.0
        %v502 = vmax.f32 %v416, 0.0
        %v503 = vmax.f32 %v465, 0.0
        %v504 = vmax.f32 %v419, 0.0
        %v505 = vmax.f32 %v468, 0.0
        %v506 = vmax.f32 %v421, 0.0
        %v507 = vmax.f32 %v470, 0.0
        %v508 = vmax.f32 %v424, 0.0
        %v509 = vmax.f32 %v473, 0.0
        %v510 = vmax.f32 %v426, 0.0
        %v511 = vmax.f32 %v475, 0.0
        %v512 = vmax.f32 %v429, 0.0
        %v513 = vmax.f32 %v478, 0.0
        %v514 = vmax.f32 %v431, 0.0
        %v515 = vmax.f32 %v480, 0.0
        %v516 = vmax.f32 %v434, 0.0
        %v517 = vmax.f32 %v483, 0.0
        %v518 = vmax.f32 %v436, 0.0
        %v519 = vmax.f32 %v485, 0.0
        %v520 = vmax.f32 %v439, 0.0
        %v521 = vmax.f32 %v488, 0.0
        %v522 = vmax.f32 %v441, 0.0
        %v523 = vmax.f32 %v490, 0.0
        %v524 = vpack.c.bf16 %v494, %v492
        %v525 = vpack.c.bf16 %v495, %v493
        %v526 = vpack.c.bf16 %v498, %v496
        %v527 = vpack.c.bf16 %v499, %v497
        %v528 = vpack.c.bf16 %v502, %v500
        %v529 = vpack.c.bf16 %v503, %v501
        %v530 = vpack.c.bf16 %v506, %v504
        %v531 = vpack.c.bf16 %v507, %v505
        %v532 = vpack.c.bf16 %v510, %v508
        %v533 = vpack.c.bf16 %v511, %v509
        %v534 = vpack.c.bf16 %v514, %v512
        %v535 = vpack.c.bf16 %v515, %v513
        %v536 = vpack.c.bf16 %v518, %v516
        %v537 = vpack.c.bf16 %v519, %v517
        %v538 = vpack.c.bf16 %v522, %v520
        %v539 = vpack.c.bf16 %v523, %v521
        %v540 = vld [vmem:[%s2] sm:$0xff]
        %v541 = vld [vmem:[%s2 + $0x8] sm:$0xff]
        %v542 = vld [vmem:[%s2 + $0x10] sm:$0xff]
        %v543 = vld [vmem:[%s2 + $0x18] sm:$0xff]
        %v544 = vld [vmem:[%s2 + $0x20] sm:$0xff]
        %v545 = vld [vmem:[%s2 + $0x28] sm:$0xff]
        %v546 = vld [vmem:[%s2 + $0x30] sm:$0xff]
        %v547 = vld [vmem:[%s2 + $0x38] sm:$0xff]
        %v548 = vld [vmem:[%s2 + $0x40] sm:$0xff]
        %v549 = vld [vmem:[%s2 + $0x48] sm:$0xff]
        %v550 = vld [vmem:[%s2 + $0x50] sm:$0xff]
        %v551 = vld [vmem:[%s2 + $0x58] sm:$0xff]
        %v552 = vld [vmem:[%s2 + $0x60] sm:$0xff]
        %v553 = vld [vmem:[%s2 + $0x68] sm:$0xff]
        %v554 = vld [vmem:[%s2 + $0x70] sm:$0xff]
        %v555 = vld [vmem:[%s2 + $0x78] sm:$0xff]
        %v556 = vld [vmem:[%s2 + $0x80] sm:$0xff]
        %v557 = vld [vmem:[%s2 + $0x88] sm:$0xff]
        %v558 = vld [vmem:[%s2 + $0x90] sm:$0xff]
        %v559 = vld [vmem:[%s2 + $0x98] sm:$0xff]
        %v560 = vld [vmem:[%s2 + $0xa0] sm:$0xff]
        %v561 = vld [vmem:[%s2 + $0xa8] sm:$0xff]
        %v562 = vld [vmem:[%s2 + $0xb0] sm:$0xff]
        %v563 = vld [vmem:[%s2 + $0xb8] sm:$0xff]
        %v564 = vld [vmem:[%s2 + $0xc0] sm:$0xff]
        %v565 = vld [vmem:[%s2 + $0xc8] sm:$0xff]
        %v566 = vld [vmem:[%s2 + $0xd0] sm:$0xff]
        %v567 = vld [vmem:[%s2 + $0xd8] sm:$0xff]
        %v568 = vld [vmem:[%s2 + $0xe0] sm:$0xff]
        %v569 = vld [vmem:[%s2 + $0xe8] sm:$0xff]
        %v570 = vld [vmem:[%s2 + $0xf0] sm:$0xff]
        %v571 = vld [vmem:[%s2 + $0xf8] sm:$0xff]
        %s572 = scalar_lea.vmem %s5, 1
        %v573 = vld [vmem:[%s572] ss:$4 sm:$0x3]
        %v575 = vperm.slane %v573, 0
        %v576 = vperm.slane %v573, 1
        %v611 = vunpack.c.l.b16 %v540
        %v612 = vunpack.c.h.b16 %v540
        %v613 = vunpack.c.l.b16 %v541
        %v614 = vunpack.c.h.b16 %v541
        %v615 = vunpack.c.l.b16 %v542
        %v616 = vunpack.c.h.b16 %v542
        %v617 = vunpack.c.l.b16 %v543
        %v618 = vunpack.c.h.b16 %v543
        %v619 = vunpack.c.l.b16 %v544
        %v620 = vunpack.c.h.b16 %v544
        %v621 = vunpack.c.l.b16 %v545
        %v622 = vunpack.c.h.b16 %v545
        %v623 = vunpack.c.l.b16 %v546
        %v624 = vunpack.c.h.b16 %v546
        %v625 = vunpack.c.l.b16 %v547
        %v626 = vunpack.c.h.b16 %v547
        %v627 = vunpack.c.l.b16 %v548
        %v628 = vunpack.c.h.b16 %v548
        %v629 = vunpack.c.l.b16 %v549
        %v630 = vunpack.c.h.b16 %v549
        %v631 = vunpack.c.l.b16 %v550
        %v632 = vunpack.c.h.b16 %v550
        %v633 = vunpack.c.l.b16 %v551
        %v634 = vunpack.c.h.b16 %v551
        %v635 = vunpack.c.l.b16 %v552
        %v636 = vunpack.c.h.b16 %v552
        %v637 = vunpack.c.l.b16 %v553
        %v638 = vunpack.c.h.b16 %v553
        %v639 = vunpack.c.l.b16 %v554
        %v640 = vunpack.c.h.b16 %v554
        %v641 = vunpack.c.l.b16 %v555
        %v642 = vunpack.c.h.b16 %v555
        %v643 = vunpack.c.l.b16 %v556
        %v644 = vunpack.c.h.b16 %v556
        %v645 = vunpack.c.l.b16 %v557
        %v646 = vunpack.c.h.b16 %v557
        %v647 = vunpack.c.l.b16 %v558
        %v648 = vunpack.c.h.b16 %v558
        %v649 = vunpack.c.l.b16 %v559
        %v650 = vunpack.c.h.b16 %v559
        %v651 = vunpack.c.l.b16 %v560
        %v652 = vunpack.c.h.b16 %v560
        %v653 = vunpack.c.l.b16 %v561
        %v654 = vunpack.c.h.b16 %v561
        %v655 = vunpack.c.l.b16 %v562
        %v656 = vunpack.c.h.b16 %v562
        %v657 = vunpack.c.l.b16 %v563
        %v658 = vunpack.c.h.b16 %v563
        %v659 = vunpack.c.l.b16 %v564
        %v660 = vunpack.c.h.b16 %v564
        %v661 = vunpack.c.l.b16 %v565
        %v662 = vunpack.c.h.b16 %v565
        %v663 = vunpack.c.l.b16 %v566
        %v664 = vunpack.c.h.b16 %v566
        %v665 = vunpack.c.l.b16 %v567
        %v666 = vunpack.c.h.b16 %v567
        %v667 = vunpack.c.l.b16 %v568
        %v668 = vunpack.c.h.b16 %v568
        %v669 = vunpack.c.l.b16 %v569
        %v670 = vunpack.c.h.b16 %v569
        %v671 = vunpack.c.l.b16 %v570
        %v672 = vunpack.c.h.b16 %v570
        %v673 = vunpack.c.l.b16 %v571
        %v674 = vunpack.c.h.b16 %v571
        %v675 = vpack.c.b16 %v613, %v611
        %v676 = vpack.c.b16 %v614, %v612
        %v677 = vpack.c.b16 %v617, %v615
        %v678 = vpack.c.b16 %v618, %v616
        %v679 = vpack.c.b16 %v621, %v619
        %v680 = vpack.c.b16 %v622, %v620
        %v681 = vpack.c.b16 %v625, %v623
        %v682 = vpack.c.b16 %v626, %v624
        %v683 = vpack.c.b16 %v629, %v627
        %v684 = vpack.c.b16 %v630, %v628
        %v685 = vpack.c.b16 %v633, %v631
        %v686 = vpack.c.b16 %v634, %v632
        %v687 = vpack.c.b16 %v637, %v635
        %v688 = vpack.c.b16 %v638, %v636
        %v689 = vpack.c.b16 %v641, %v639
        %v690 = vpack.c.b16 %v642, %v640
        %v691 = vpack.c.b16 %v645, %v643
        %v692 = vpack.c.b16 %v646, %v644
        %v693 = vpack.c.b16 %v649, %v647
        %v694 = vpack.c.b16 %v650, %v648
        %v695 = vpack.c.b16 %v653, %v651
        %v696 = vpack.c.b16 %v654, %v652
        %v697 = vpack.c.b16 %v657, %v655
        %v698 = vpack.c.b16 %v658, %v656
        %v699 = vpack.c.b16 %v661, %v659
        %v700 = vpack.c.b16 %v662, %v660
        %v701 = vpack.c.b16 %v665, %v663
        %v702 = vpack.c.b16 %v666, %v664
        %v703 = vpack.c.b16 %v669, %v667
        %v704 = vpack.c.b16 %v670, %v668
        %v705 = vpack.c.b16 %v673, %v671
        %v706 = vpack.c.b16 %v674, %v672
        %739 = vmatpush.bf16.msra.mxu0 %v689
        %740 = vmatpush.bf16.msra.mxu0 %v687
        %741 = vmatpush.bf16.msra.mxu0 %v685
        %742 = vmatpush.bf16.msra.mxu0 %v683
        %743 = vmatpush.bf16.msra.mxu0 %v681
        %744 = vmatpush.bf16.msra.mxu0 %v679
        %745 = vmatpush.bf16.msra.mxu0 %v677
        %746 = vmatpush.bf16.msra.mxu0 %v675
        %747 = vmatmul.bf16.gmra.mxu0 %v524
        %v748 = vpop.f32.mrf.mxu0
        %v749 = vadd.f32 %v575, %v748
        %v750 = vpop.f32.mrf.mxu0
        %v751 = vadd.f32 %v575, %v750
        %752 = vmatmul.bf16.gmra.mxu0 %v526
        %v753 = vpop.f32.mrf.mxu0
        %v754 = vadd.f32 %v575, %v753
        %v755 = vpop.f32.mrf.mxu0
        %v756 = vadd.f32 %v575, %v755
        %757 = vmatmul.bf16.gmra.mxu0 %v528
        %v758 = vpop.f32.mrf.mxu0
        %v759 = vadd.f32 %v575, %v758
        %v760 = vpop.f32.mrf.mxu0
        %v761 = vadd.f32 %v575, %v760
        %762 = vmatmul.bf16.gmra.mxu0 %v530
        %v763 = vpop.f32.mrf.mxu0
        %v764 = vadd.f32 %v575, %v763
        %v765 = vpop.f32.mrf.mxu0
        %v766 = vadd.f32 %v575, %v765
        %767 = vmatmul.bf16.gmra.mxu0 %v532
        %v768 = vpop.f32.mrf.mxu0
        %v769 = vadd.f32 %v575, %v768
        %v770 = vpop.f32.mrf.mxu0
        %v771 = vadd.f32 %v575, %v770
        %772 = vmatmul.bf16.gmra.mxu0 %v534
        %v773 = vpop.f32.mrf.mxu0
        %v774 = vadd.f32 %v575, %v773
        %v775 = vpop.f32.mrf.mxu0
        %v776 = vadd.f32 %v575, %v775
        %777 = vmatmul.bf16.gmra.mxu0 %v536
        %v778 = vpop.f32.mrf.mxu0
        %v779 = vadd.f32 %v575, %v778
        %v780 = vpop.f32.mrf.mxu0
        %v781 = vadd.f32 %v575, %v780
        %782 = vmatmul.bf16.gmra.mxu0 %v538
        %v783 = vpop.f32.mrf.mxu0
        %v784 = vadd.f32 %v575, %v783
        %v785 = vpop.f32.mrf.mxu0
        %v786 = vadd.f32 %v575, %v785
        %787 = vdwg.mxu0
        %788 = vmatpush.bf16.msra.mxu0 %v705
        %789 = vmatpush.bf16.msra.mxu0 %v703
        %790 = vmatpush.bf16.msra.mxu0 %v701
        %791 = vmatpush.bf16.msra.mxu0 %v699
        %792 = vmatpush.bf16.msra.mxu0 %v697
        %793 = vmatpush.bf16.msra.mxu0 %v695
        %794 = vmatpush.bf16.msra.mxu0 %v693
        %795 = vmatpush.bf16.msra.mxu0 %v691
        %796 = vmatmul.bf16.gmra.mxu0 %v525
        %v797 = vpop.f32.mrf.mxu0
        %v798 = vadd.f32 %v749, %v797
        %v799 = vpop.f32.mrf.mxu0
        %v800 = vadd.f32 %v751, %v799
        %801 = vmatmul.bf16.gmra.mxu0 %v527
        %v802 = vpop.f32.mrf.mxu0
        %v803 = vadd.f32 %v754, %v802
        %v804 = vpop.f32.mrf.mxu0
        %v805 = vadd.f32 %v756, %v804
        %806 = vmatmul.bf16.gmra.mxu0 %v529
        %v807 = vpop.f32.mrf.mxu0
        %v808 = vadd.f32 %v759, %v807
        %v809 = vpop.f32.mrf.mxu0
        %v810 = vadd.f32 %v761, %v809
        %811 = vmatmul.bf16.gmra.mxu0 %v531
        %v812 = vpop.f32.mrf.mxu0
        %v813 = vadd.f32 %v764, %v812
        %v814 = vpop.f32.mrf.mxu0
        %v815 = vadd.f32 %v766, %v814
        %816 = vmatmul.bf16.gmra.mxu0 %v533
        %v817 = vpop.f32.mrf.mxu0
        %v818 = vadd.f32 %v769, %v817
        %v819 = vpop.f32.mrf.mxu0
        %v820 = vadd.f32 %v771, %v819
        %821 = vmatmul.bf16.gmra.mxu0 %v535
        %v822 = vpop.f32.mrf.mxu0
        %v823 = vadd.f32 %v774, %v822
        %v824 = vpop.f32.mrf.mxu0
        %v825 = vadd.f32 %v776, %v824
        %826 = vmatmul.bf16.gmra.mxu0 %v537
        %v827 = vpop.f32.mrf.mxu0
        %v828 = vadd.f32 %v779, %v827
        %v829 = vpop.f32.mrf.mxu0
        %v830 = vadd.f32 %v781, %v829
        %831 = vmatmul.bf16.gmra.mxu0 %v539
        %v832 = vpop.f32.mrf.mxu0
        %v833 = vadd.f32 %v784, %v832
        %v834 = vpop.f32.mrf.mxu0
        %v835 = vadd.f32 %v786, %v834
        %836 = vdwg.mxu0
        %837 = vmatpush.bf16.msra.mxu0 %v690
        %838 = vmatpush.bf16.msra.mxu0 %v688
        %839 = vmatpush.bf16.msra.mxu0 %v686
        %840 = vmatpush.bf16.msra.mxu0 %v684
        %841 = vmatpush.bf16.msra.mxu0 %v682
        %842 = vmatpush.bf16.msra.mxu0 %v680
        %843 = vmatpush.bf16.msra.mxu0 %v678
        %844 = vmatpush.bf16.msra.mxu0 %v676
        %845 = vmatmul.bf16.gmra.mxu0 %v524
        %v846 = vpop.f32.mrf.mxu0
        %v847 = vadd.f32 %v576, %v846
        %v848 = vpop.f32.mrf.mxu0
        %v849 = vadd.f32 %v576, %v848
        %850 = vmatmul.bf16.gmra.mxu0 %v526
        %v851 = vpop.f32.mrf.mxu0
        %v852 = vadd.f32 %v576, %v851
        %v853 = vpop.f32.mrf.mxu0
        %v854 = vadd.f32 %v576, %v853
        %855 = vmatmul.bf16.gmra.mxu0 %v528
        %v856 = vpop.f32.mrf.mxu0
        %v857 = vadd.f32 %v576, %v856
        %v858 = vpop.f32.mrf.mxu0
        %v859 = vadd.f32 %v576, %v858
        %860 = vmatmul.bf16.gmra.mxu0 %v530
        %v861 = vpop.f32.mrf.mxu0
        %v862 = vadd.f32 %v576, %v861
        %v863 = vpop.f32.mrf.mxu0
        %v864 = vadd.f32 %v576, %v863
        %865 = vmatmul.bf16.gmra.mxu0 %v532
        %v866 = vpop.f32.mrf.mxu0
        %v867 = vadd.f32 %v576, %v866
        %v868 = vpop.f32.mrf.mxu0
        %v869 = vadd.f32 %v576, %v868
        %870 = vmatmul.bf16.gmra.mxu0 %v534
        %v871 = vpop.f32.mrf.mxu0
        %v872 = vadd.f32 %v576, %v871
        %v873 = vpop.f32.mrf.mxu0
        %v874 = vadd.f32 %v576, %v873
        %875 = vmatmul.bf16.gmra.mxu0 %v536
        %v876 = vpop.f32.mrf.mxu0
        %v877 = vadd.f32 %v576, %v876
        %v878 = vpop.f32.mrf.mxu0
        %v879 = vadd.f32 %v576, %v878
        %880 = vmatmul.bf16.gmra.mxu0 %v538
        %v881 = vpop.f32.mrf.mxu0
        %v882 = vadd.f32 %v576, %v881
        %v883 = vpop.f32.mrf.mxu0
        %v884 = vadd.f32 %v576, %v883
        %885 = vdwg.mxu0
        %886 = vmatpush.bf16.msra.mxu0 %v706
        %887 = vmatpush.bf16.msra.mxu0 %v704
        %888 = vmatpush.bf16.msra.mxu0 %v702
        %889 = vmatpush.bf16.msra.mxu0 %v700
        %890 = vmatpush.bf16.msra.mxu0 %v698
        %891 = vmatpush.bf16.msra.mxu0 %v696
        %892 = vmatpush.bf16.msra.mxu0 %v694
        %893 = vmatpush.bf16.msra.mxu0 %v692
        %894 = vmatmul.bf16.gmra.mxu0 %v525
        %v895 = vpop.f32.mrf.mxu0
        %v896 = vadd.f32 %v847, %v895
        %v897 = vpop.f32.mrf.mxu0
        %v898 = vadd.f32 %v849, %v897
        %899 = vmatmul.bf16.gmra.mxu0 %v527
        %v900 = vpop.f32.mrf.mxu0
        %v901 = vadd.f32 %v852, %v900
        %v902 = vpop.f32.mrf.mxu0
        %v903 = vadd.f32 %v854, %v902
        %904 = vmatmul.bf16.gmra.mxu0 %v529
        %v905 = vpop.f32.mrf.mxu0
        %v906 = vadd.f32 %v857, %v905
        %v907 = vpop.f32.mrf.mxu0
        %v908 = vadd.f32 %v859, %v907
        %909 = vmatmul.bf16.gmra.mxu0 %v531
        %v910 = vpop.f32.mrf.mxu0
        %v911 = vadd.f32 %v862, %v910
        %v912 = vpop.f32.mrf.mxu0
        %v913 = vadd.f32 %v864, %v912
        %914 = vmatmul.bf16.gmra.mxu0 %v533
        %v915 = vpop.f32.mrf.mxu0
        %v916 = vadd.f32 %v867, %v915
        %v917 = vpop.f32.mrf.mxu0
        %v918 = vadd.f32 %v869, %v917
        %919 = vmatmul.bf16.gmra.mxu0 %v535
        %v920 = vpop.f32.mrf.mxu0
        %v921 = vadd.f32 %v872, %v920
        %v922 = vpop.f32.mrf.mxu0
        %v923 = vadd.f32 %v874, %v922
        %924 = vmatmul.bf16.gmra.mxu0 %v537
        %v925 = vpop.f32.mrf.mxu0
        %v926 = vadd.f32 %v877, %v925
        %v927 = vpop.f32.mrf.mxu0
        %v928 = vadd.f32 %v879, %v927
        %929 = vmatmul.bf16.gmra.mxu0 %v539
        %v930 = vpop.f32.mrf.mxu0
        %v931 = vadd.f32 %v882, %v930
        %v932 = vpop.f32.mrf.mxu0
        %v933 = vadd.f32 %v884, %v932
        %934 = vdwg.mxu0
        %v935 = vmax.f32 %v798, 0.0
        %v936 = vmax.f32 %v896, 0.0
        %v937 = vmax.f32 %v800, 0.0
        %v938 = vmax.f32 %v898, 0.0
        %v939 = vmax.f32 %v803, 0.0
        %v940 = vmax.f32 %v901, 0.0
        %v941 = vmax.f32 %v805, 0.0
        %v942 = vmax.f32 %v903, 0.0
        %v943 = vmax.f32 %v808, 0.0
        %v944 = vmax.f32 %v906, 0.0
        %v945 = vmax.f32 %v810, 0.0
        %v946 = vmax.f32 %v908, 0.0
        %v947 = vmax.f32 %v813, 0.0
        %v948 = vmax.f32 %v911, 0.0
        %v949 = vmax.f32 %v815, 0.0
        %v950 = vmax.f32 %v913, 0.0
        %v951 = vmax.f32 %v818, 0.0
        %v952 = vmax.f32 %v916, 0.0
        %v953 = vmax.f32 %v820, 0.0
        %v954 = vmax.f32 %v918, 0.0
        %v955 = vmax.f32 %v823, 0.0
        %v956 = vmax.f32 %v921, 0.0
        %v957 = vmax.f32 %v825, 0.0
        %v958 = vmax.f32 %v923, 0.0
        %v959 = vmax.f32 %v828, 0.0
        %v960 = vmax.f32 %v926, 0.0
        %v961 = vmax.f32 %v830, 0.0
        %v962 = vmax.f32 %v928, 0.0
        %v963 = vmax.f32 %v833, 0.0
        %v964 = vmax.f32 %v931, 0.0
        %v965 = vmax.f32 %v835, 0.0
        %v966 = vmax.f32 %v933, 0.0
        %v967 = vpack.c.bf16 %v937, %v935
        %v968 = vpack.c.bf16 %v938, %v936
        %v969 = vpack.c.bf16 %v941, %v939
        %v970 = vpack.c.bf16 %v942, %v940
        %v971 = vpack.c.bf16 %v945, %v943
        %v972 = vpack.c.bf16 %v946, %v944
        %v973 = vpack.c.bf16 %v949, %v947
        %v974 = vpack.c.bf16 %v950, %v948
        %v975 = vpack.c.bf16 %v953, %v951
        %v976 = vpack.c.bf16 %v954, %v952
        %v977 = vpack.c.bf16 %v957, %v955
        %v978 = vpack.c.bf16 %v958, %v956
        %v979 = vpack.c.bf16 %v961, %v959
        %v980 = vpack.c.bf16 %v962, %v960
        %v981 = vpack.c.bf16 %v965, %v963
        %v982 = vpack.c.bf16 %v966, %v964
        %v983 = vld [vmem:[#allocation2] sm:$0xff]
        %v984 = vld [vmem:[#allocation2 + $0x8] sm:$0xff]
        %v985 = vld [vmem:[#allocation2 + $0x10] sm:$0xff]
        %v986 = vld [vmem:[#allocation2 + $0x18] sm:$0xff]
        %v987 = vld [vmem:[#allocation2 + $0x20] sm:$0xff]
        %v988 = vld [vmem:[#allocation2 + $0x28] sm:$0xff]
        %v989 = vld [vmem:[#allocation2 + $0x30] sm:$0xff]
        %v990 = vld [vmem:[#allocation2 + $0x38] sm:$0xff]
        %v991 = vld [vmem:[#allocation2 + $0x40] sm:$0xff]
        %v992 = vld [vmem:[#allocation2 + $0x48] sm:$0xff]
        %v993 = vld [vmem:[#allocation2 + $0x50] sm:$0xff]
        %v994 = vld [vmem:[#allocation2 + $0x58] sm:$0xff]
        %v995 = vld [vmem:[#allocation2 + $0x60] sm:$0xff]
        %v996 = vld [vmem:[#allocation2 + $0x68] sm:$0xff]
        %v997 = vld [vmem:[#allocation2 + $0x70] sm:$0xff]
        %v998 = vld [vmem:[#allocation2 + $0x78] sm:$0xff]
        %v999 = vld [vmem:[#allocation2 + $0x80] sm:$0xff]
        %v1000 = vld [vmem:[#allocation2 + $0x88] sm:$0xff]
        %v1001 = vld [vmem:[#allocation2 + $0x90] sm:$0xff]
        %v1002 = vld [vmem:[#allocation2 + $0x98] sm:$0xff]
        %v1003 = vld [vmem:[#allocation2 + $0xa0] sm:$0xff]
        %v1004 = vld [vmem:[#allocation2 + $0xa8] sm:$0xff]
        %v1005 = vld [vmem:[#allocation2 + $0xb0] sm:$0xff]
        %v1006 = vld [vmem:[#allocation2 + $0xb8] sm:$0xff]
        %v1007 = vld [vmem:[#allocation2 + $0xc0] sm:$0xff]
        %v1008 = vld [vmem:[#allocation2 + $0xc8] sm:$0xff]
        %v1009 = vld [vmem:[#allocation2 + $0xd0] sm:$0xff]
        %v1010 = vld [vmem:[#allocation2 + $0xd8] sm:$0xff]
        %v1011 = vld [vmem:[#allocation2 + $0xe0] sm:$0xff]
        %v1012 = vld [vmem:[#allocation2 + $0xe8] sm:$0xff]
        %v1013 = vld [vmem:[#allocation2 + $0xf0] sm:$0xff]
        %v1014 = vld [vmem:[#allocation2 + $0xf8] sm:$0xff]
        %s1015 = scalar_lea.vmem %s5, 2
        %v1016 = vld [vmem:[%s1015] ss:$4 sm:$0x3]
        %v1018 = vperm.slane %v1016, 0
        %v1019 = vperm.slane %v1016, 1
        %v1054 = vunpack.c.l.b16 %v983
        %v1055 = vunpack.c.h.b16 %v983
        %v1056 = vunpack.c.l.b16 %v984
        %v1057 = vunpack.c.h.b16 %v984
        %v1058 = vunpack.c.l.b16 %v985
        %v1059 = vunpack.c.h.b16 %v985
        %v1060 = vunpack.c.l.b16 %v986
        %v1061 = vunpack.c.h.b16 %v986
        %v1062 = vunpack.c.l.b16 %v987
        %v1063 = vunpack.c.h.b16 %v987
        %v1064 = vunpack.c.l.b16 %v988
        %v1065 = vunpack.c.h.b16 %v988
        %v1066 = vunpack.c.l.b16 %v989
        %v1067 = vunpack.c.h.b16 %v989
        %v1068 = vunpack.c.l.b16 %v990
        %v1069 = vunpack.c.h.b16 %v990
        %v1070 = vunpack.c.l.b16 %v991
        %v1071 = vunpack.c.h.b16 %v991
        %v1072 = vunpack.c.l.b16 %v992
        %v1073 = vunpack.c.h.b16 %v992
        %v1074 = vunpack.c.l.b16 %v993
        %v1075 = vunpack.c.h.b16 %v993
        %v1076 = vunpack.c.l.b16 %v994
        %v1077 = vunpack.c.h.b16 %v994
        %v1078 = vunpack.c.l.b16 %v995
        %v1079 = vunpack.c.h.b16 %v995
        %v1080 = vunpack.c.l.b16 %v996
        %v1081 = vunpack.c.h.b16 %v996
        %v1082 = vunpack.c.l.b16 %v997
        %v1083 = vunpack.c.h.b16 %v997
        %v1084 = vunpack.c.l.b16 %v998
        %v1085 = vunpack.c.h.b16 %v998
        %v1086 = vunpack.c.l.b16 %v999
        %v1087 = vunpack.c.h.b16 %v999
        %v1088 = vunpack.c.l.b16 %v1000
        %v1089 = vunpack.c.h.b16 %v1000
        %v1090 = vunpack.c.l.b16 %v1001
        %v1091 = vunpack.c.h.b16 %v1001
        %v1092 = vunpack.c.l.b16 %v1002
        %v1093 = vunpack.c.h.b16 %v1002
        %v1094 = vunpack.c.l.b16 %v1003
        %v1095 = vunpack.c.h.b16 %v1003
        %v1096 = vunpack.c.l.b16 %v1004
        %v1097 = vunpack.c.h.b16 %v1004
        %v1098 = vunpack.c.l.b16 %v1005
        %v1099 = vunpack.c.h.b16 %v1005
        %v1100 = vunpack.c.l.b16 %v1006
        %v1101 = vunpack.c.h.b16 %v1006
        %v1102 = vunpack.c.l.b16 %v1007
        %v1103 = vunpack.c.h.b16 %v1007
        %v1104 = vunpack.c.l.b16 %v1008
        %v1105 = vunpack.c.h.b16 %v1008
        %v1106 = vunpack.c.l.b16 %v1009
        %v1107 = vunpack.c.h.b16 %v1009
        %v1108 = vunpack.c.l.b16 %v1010
        %v1109 = vunpack.c.h.b16 %v1010
        %v1110 = vunpack.c.l.b16 %v1011
        %v1111 = vunpack.c.h.b16 %v1011
        %v1112 = vunpack.c.l.b16 %v1012
        %v1113 = vunpack.c.h.b16 %v1012
        %v1114 = vunpack.c.l.b16 %v1013
        %v1115 = vunpack.c.h.b16 %v1013
        %v1116 = vunpack.c.l.b16 %v1014
        %v1117 = vunpack.c.h.b16 %v1014
        %v1118 = vpack.c.b16 %v1056, %v1054
        %v1119 = vpack.c.b16 %v1057, %v1055
        %v1120 = vpack.c.b16 %v1060, %v1058
        %v1121 = vpack.c.b16 %v1061, %v1059
        %v1122 = vpack.c.b16 %v1064, %v1062
        %v1123 = vpack.c.b16 %v1065, %v1063
        %v1124 = vpack.c.b16 %v1068, %v1066
        %v1125 = vpack.c.b16 %v1069, %v1067
        %v1126 = vpack.c.b16 %v1072, %v1070
        %v1127 = vpack.c.b16 %v1073, %v1071
        %v1128 = vpack.c.b16 %v1076, %v1074
        %v1129 = vpack.c.b16 %v1077, %v1075
        %v1130 = vpack.c.b16 %v1080, %v1078
        %v1131 = vpack.c.b16 %v1081, %v1079
        %v1132 = vpack.c.b16 %v1084, %v1082
        %v1133 = vpack.c.b16 %v1085, %v1083
        %v1134 = vpack.c.b16 %v1088, %v1086
        %v1135 = vpack.c.b16 %v1089, %v1087
        %v1136 = vpack.c.b16 %v1092, %v1090
        %v1137 = vpack.c.b16 %v1093, %v1091
        %v1138 = vpack.c.b16 %v1096, %v1094
        %v1139 = vpack.c.b16 %v1097, %v1095
        %v1140 = vpack.c.b16 %v1100, %v1098
        %v1141 = vpack.c.b16 %v1101, %v1099
        %v1142 = vpack.c.b16 %v1104, %v1102
        %v1143 = vpack.c.b16 %v1105, %v1103
        %v1144 = vpack.c.b16 %v1108, %v1106
        %v1145 = vpack.c.b16 %v1109, %v1107
        %v1146 = vpack.c.b16 %v1112, %v1110
        %v1147 = vpack.c.b16 %v1113, %v1111
        %v1148 = vpack.c.b16 %v1116, %v1114
        %v1149 = vpack.c.b16 %v1117, %v1115
        %1182 = vmatpush.bf16.msra.mxu0 %v1132
        %1183 = vmatpush.bf16.msra.mxu0 %v1130
        %1184 = vmatpush.bf16.msra.mxu0 %v1128
        %1185 = vmatpush.bf16.msra.mxu0 %v1126
        %1186 = vmatpush.bf16.msra.mxu0 %v1124
        %1187 = vmatpush.bf16.msra.mxu0 %v1122
        %1188 = vmatpush.bf16.msra.mxu0 %v1120
        %1189 = vmatpush.bf16.msra.mxu0 %v1118
        %1190 = vmatmul.bf16.gmra.mxu0 %v967
        %v1191 = vpop.f32.mrf.mxu0
        %v1192 = vadd.f32 %v1018, %v1191
        %v1193 = vpop.f32.mrf.mxu0
        %v1194 = vadd.f32 %v1018, %v1193
        %1195 = vmatmul.bf16.gmra.mxu0 %v969
        %v1196 = vpop.f32.mrf.mxu0
        %v1197 = vadd.f32 %v1018, %v1196
        %v1198 = vpop.f32.mrf.mxu0
        %v1199 = vadd.f32 %v1018, %v1198
        %1200 = vmatmul.bf16.gmra.mxu0 %v971
        %v1201 = vpop.f32.mrf.mxu0
        %v1202 = vadd.f32 %v1018, %v1201
        %v1203 = vpop.f32.mrf.mxu0
        %v1204 = vadd.f32 %v1018, %v1203
        %1205 = vmatmul.bf16.gmra.mxu0 %v973
        %v1206 = vpop.f32.mrf.mxu0
        %v1207 = vadd.f32 %v1018, %v1206
        %v1208 = vpop.f32.mrf.mxu0
        %v1209 = vadd.f32 %v1018, %v1208
        %1210 = vmatmul.bf16.gmra.mxu0 %v975
        %v1211 = vpop.f32.mrf.mxu0
        %v1212 = vadd.f32 %v1018, %v1211
        %v1213 = vpop.f32.mrf.mxu0
        %v1214 = vadd.f32 %v1018, %v1213
        %1215 = vmatmul.bf16.gmra.mxu0 %v977
        %v1216 = vpop.f32.mrf.mxu0
        %v1217 = vadd.f32 %v1018, %v1216
        %v1218 = vpop.f32.mrf.mxu0
        %v1219 = vadd.f32 %v1018, %v1218
        %1220 = vmatmul.bf16.gmra.mxu0 %v979
        %v1221 = vpop.f32.mrf.mxu0
        %v1222 = vadd.f32 %v1018, %v1221
        %v1223 = vpop.f32.mrf.mxu0
        %v1224 = vadd.f32 %v1018, %v1223
        %1225 = vmatmul.bf16.gmra.mxu0 %v981
        %v1226 = vpop.f32.mrf.mxu0
        %v1227 = vadd.f32 %v1018, %v1226
        %v1228 = vpop.f32.mrf.mxu0
        %v1229 = vadd.f32 %v1018, %v1228
        %1230 = vdwg.mxu0
        %1231 = vmatpush.bf16.msra.mxu0 %v1148
        %1232 = vmatpush.bf16.msra.mxu0 %v1146
        %1233 = vmatpush.bf16.msra.mxu0 %v1144
        %1234 = vmatpush.bf16.msra.mxu0 %v1142
        %1235 = vmatpush.bf16.msra.mxu0 %v1140
        %1236 = vmatpush.bf16.msra.mxu0 %v1138
        %1237 = vmatpush.bf16.msra.mxu0 %v1136
        %1238 = vmatpush.bf16.msra.mxu0 %v1134
        %1239 = vmatmul.bf16.gmra.mxu0 %v968
        %v1240 = vpop.f32.mrf.mxu0
        %v1241 = vadd.f32 %v1192, %v1240
        %v1242 = vpop.f32.mrf.mxu0
        %v1243 = vadd.f32 %v1194, %v1242
        %1244 = vmatmul.bf16.gmra.mxu0 %v970
        %v1245 = vpop.f32.mrf.mxu0
        %v1246 = vadd.f32 %v1197, %v1245
        %v1247 = vpop.f32.mrf.mxu0
        %v1248 = vadd.f32 %v1199, %v1247
        %1249 = vmatmul.bf16.gmra.mxu0 %v972
        %v1250 = vpop.f32.mrf.mxu0
        %v1251 = vadd.f32 %v1202, %v1250
        %v1252 = vpop.f32.mrf.mxu0
        %v1253 = vadd.f32 %v1204, %v1252
        %1254 = vmatmul.bf16.gmra.mxu0 %v974
        %v1255 = vpop.f32.mrf.mxu0
        %v1256 = vadd.f32 %v1207, %v1255
        %v1257 = vpop.f32.mrf.mxu0
        %v1258 = vadd.f32 %v1209, %v1257
        %1259 = vmatmul.bf16.gmra.mxu0 %v976
        %v1260 = vpop.f32.mrf.mxu0
        %v1261 = vadd.f32 %v1212, %v1260
        %v1262 = vpop.f32.mrf.mxu0
        %v1263 = vadd.f32 %v1214, %v1262
        %1264 = vmatmul.bf16.gmra.mxu0 %v978
        %v1265 = vpop.f32.mrf.mxu0
        %v1266 = vadd.f32 %v1217, %v1265
        %v1267 = vpop.f32.mrf.mxu0
        %v1268 = vadd.f32 %v1219, %v1267
        %1269 = vmatmul.bf16.gmra.mxu0 %v980
        %v1270 = vpop.f32.mrf.mxu0
        %v1271 = vadd.f32 %v1222, %v1270
        %v1272 = vpop.f32.mrf.mxu0
        %v1273 = vadd.f32 %v1224, %v1272
        %1274 = vmatmul.bf16.gmra.mxu0 %v982
        %v1275 = vpop.f32.mrf.mxu0
        %v1276 = vadd.f32 %v1227, %v1275
        %v1277 = vpop.f32.mrf.mxu0
        %v1278 = vadd.f32 %v1229, %v1277
        %1279 = vdwg.mxu0
        %1280 = vmatpush.bf16.msra.mxu0 %v1133
        %1281 = vmatpush.bf16.msra.mxu0 %v1131
        %1282 = vmatpush.bf16.msra.mxu0 %v1129
        %1283 = vmatpush.bf16.msra.mxu0 %v1127
        %1284 = vmatpush.bf16.msra.mxu0 %v1125
        %1285 = vmatpush.bf16.msra.mxu0 %v1123
        %1286 = vmatpush.bf16.msra.mxu0 %v1121
        %1287 = vmatpush.bf16.msra.mxu0 %v1119
        %1288 = vmatmul.bf16.gmra.mxu0 %v967
        %v1289 = vpop.f32.mrf.mxu0
        %v1290 = vadd.f32 %v1019, %v1289
        %v1291 = vpop.f32.mrf.mxu0
        %v1292 = vadd.f32 %v1019, %v1291
        %1293 = vmatmul.bf16.gmra.mxu0 %v969
        %v1294 = vpop.f32.mrf.mxu0
        %v1295 = vadd.f32 %v1019, %v1294
        %v1296 = vpop.f32.mrf.mxu0
        %v1297 = vadd.f32 %v1019, %v1296
        %1298 = vmatmul.bf16.gmra.mxu0 %v971
        %v1299 = vpop.f32.mrf.mxu0
        %v1300 = vadd.f32 %v1019, %v1299
        %v1301 = vpop.f32.mrf.mxu0
        %v1302 = vadd.f32 %v1019, %v1301
        %1303 = vmatmul.bf16.gmra.mxu0 %v973
        %v1304 = vpop.f32.mrf.mxu0
        %v1305 = vadd.f32 %v1019, %v1304
        %v1306 = vpop.f32.mrf.mxu0
        %v1307 = vadd.f32 %v1019, %v1306
        %1308 = vmatmul.bf16.gmra.mxu0 %v975
        %v1309 = vpop.f32.mrf.mxu0
        %v1310 = vadd.f32 %v1019, %v1309
        %v1311 = vpop.f32.mrf.mxu0
        %v1312 = vadd.f32 %v1019, %v1311
        %1313 = vmatmul.bf16.gmra.mxu0 %v977
        %v1314 = vpop.f32.mrf.mxu0
        %v1315 = vadd.f32 %v1019, %v1314
        %v1316 = vpop.f32.mrf.mxu0
        %v1317 = vadd.f32 %v1019, %v1316
        %1318 = vmatmul.bf16.gmra.mxu0 %v979
        %v1319 = vpop.f32.mrf.mxu0
        %v1320 = vadd.f32 %v1019, %v1319
        %v1321 = vpop.f32.mrf.mxu0
        %v1322 = vadd.f32 %v1019, %v1321
        %1323 = vmatmul.bf16.gmra.mxu0 %v981
        %v1324 = vpop.f32.mrf.mxu0
        %v1325 = vadd.f32 %v1019, %v1324
        %v1326 = vpop.f32.mrf.mxu0
        %v1327 = vadd.f32 %v1019, %v1326
        %1328 = vdwg.mxu0
        %1329 = vmatpush.bf16.msra.mxu0 %v1149
        %1330 = vmatpush.bf16.msra.mxu0 %v1147
        %1331 = vmatpush.bf16.msra.mxu0 %v1145
        %1332 = vmatpush.bf16.msra.mxu0 %v1143
        %1333 = vmatpush.bf16.msra.mxu0 %v1141
        %1334 = vmatpush.bf16.msra.mxu0 %v1139
        %1335 = vmatpush.bf16.msra.mxu0 %v1137
        %1336 = vmatpush.bf16.msra.mxu0 %v1135
        %1337 = vmatmul.bf16.gmra.mxu0 %v968
        %v1338 = vpop.f32.mrf.mxu0
        %v1339 = vadd.f32 %v1290, %v1338
        %v1340 = vpop.f32.mrf.mxu0
        %v1341 = vadd.f32 %v1292, %v1340
        %1342 = vmatmul.bf16.gmra.mxu0 %v970
        %v1343 = vpop.f32.mrf.mxu0
        %v1344 = vadd.f32 %v1295, %v1343
        %v1345 = vpop.f32.mrf.mxu0
        %v1346 = vadd.f32 %v1297, %v1345
        %1347 = vmatmul.bf16.gmra.mxu0 %v972
        %v1348 = vpop.f32.mrf.mxu0
        %v1349 = vadd.f32 %v1300, %v1348
        %v1350 = vpop.f32.mrf.mxu0
        %v1351 = vadd.f32 %v1302, %v1350
        %1352 = vmatmul.bf16.gmra.mxu0 %v974
        %v1353 = vpop.f32.mrf.mxu0
        %v1354 = vadd.f32 %v1305, %v1353
        %v1355 = vpop.f32.mrf.mxu0
        %v1356 = vadd.f32 %v1307, %v1355
        %1357 = vmatmul.bf16.gmra.mxu0 %v976
        %v1358 = vpop.f32.mrf.mxu0
        %v1359 = vadd.f32 %v1310, %v1358
        %v1360 = vpop.f32.mrf.mxu0
        %v1361 = vadd.f32 %v1312, %v1360
        %1362 = vmatmul.bf16.gmra.mxu0 %v978
        %v1363 = vpop.f32.mrf.mxu0
        %v1364 = vadd.f32 %v1315, %v1363
        %v1365 = vpop.f32.mrf.mxu0
        %v1366 = vadd.f32 %v1317, %v1365
        %1367 = vmatmul.bf16.gmra.mxu0 %v980
        %v1368 = vpop.f32.mrf.mxu0
        %v1369 = vadd.f32 %v1320, %v1368
        %v1370 = vpop.f32.mrf.mxu0
        %v1371 = vadd.f32 %v1322, %v1370
        %1372 = vmatmul.bf16.gmra.mxu0 %v982
        %v1373 = vpop.f32.mrf.mxu0
        %v1374 = vadd.f32 %v1325, %v1373
        %v1375 = vpop.f32.mrf.mxu0
        %v1376 = vadd.f32 %v1327, %v1375
        %1377 = vdwg.mxu0
        %v1378 = vmax.f32 %v1241, 0.0
        %v1379 = vmax.f32 %v1339, 0.0
        %v1380 = vmax.f32 %v1243, 0.0
        %v1381 = vmax.f32 %v1341, 0.0
        %v1382 = vmax.f32 %v1246, 0.0
        %v1383 = vmax.f32 %v1344, 0.0
        %v1384 = vmax.f32 %v1248, 0.0
        %v1385 = vmax.f32 %v1346, 0.0
        %v1386 = vmax.f32 %v1251, 0.0
        %v1387 = vmax.f32 %v1349, 0.0
        %v1388 = vmax.f32 %v1253, 0.0
        %v1389 = vmax.f32 %v1351, 0.0
        %v1390 = vmax.f32 %v1256, 0.0
        %v1391 = vmax.f32 %v1354, 0.0
        %v1392 = vmax.f32 %v1258, 0.0
        %v1393 = vmax.f32 %v1356, 0.0
        %v1394 = vmax.f32 %v1261, 0.0
        %v1395 = vmax.f32 %v1359, 0.0
        %v1396 = vmax.f32 %v1263, 0.0
        %v1397 = vmax.f32 %v1361, 0.0
        %v1398 = vmax.f32 %v1266, 0.0
        %v1399 = vmax.f32 %v1364, 0.0
        %v1400 = vmax.f32 %v1268, 0.0
        %v1401 = vmax.f32 %v1366, 0.0
        %v1402 = vmax.f32 %v1271, 0.0
        %v1403 = vmax.f32 %v1369, 0.0
        %v1404 = vmax.f32 %v1273, 0.0
        %v1405 = vmax.f32 %v1371, 0.0
        %v1406 = vmax.f32 %v1276, 0.0
        %v1407 = vmax.f32 %v1374, 0.0
        %v1408 = vmax.f32 %v1278, 0.0
        %v1409 = vmax.f32 %v1376, 0.0
        %v1410 = vpack.c.bf16 %v1380, %v1378
        %v1411 = vpack.c.bf16 %v1381, %v1379
        %v1412 = vpack.c.bf16 %v1384, %v1382
        %v1413 = vpack.c.bf16 %v1385, %v1383
        %v1414 = vpack.c.bf16 %v1388, %v1386
        %v1415 = vpack.c.bf16 %v1389, %v1387
        %v1416 = vpack.c.bf16 %v1392, %v1390
        %v1417 = vpack.c.bf16 %v1393, %v1391
        %v1418 = vpack.c.bf16 %v1396, %v1394
        %v1419 = vpack.c.bf16 %v1397, %v1395
        %v1420 = vpack.c.bf16 %v1400, %v1398
        %v1421 = vpack.c.bf16 %v1401, %v1399
        %v1422 = vpack.c.bf16 %v1404, %v1402
        %v1423 = vpack.c.bf16 %v1405, %v1403
        %v1424 = vpack.c.bf16 %v1408, %v1406
        %v1425 = vpack.c.bf16 %v1409, %v1407
        %v1426 = vld [vmem:[#allocation5] sm:$0xf]
        %v1427 = vld [vmem:[#allocation5 + $0x4] sm:$0xf]
        %v1428 = vld [vmem:[#allocation5 + $0x8] sm:$0xf]
        %v1429 = vld [vmem:[#allocation5 + $0xc] sm:$0xf]
        %v1430 = vld [vmem:[#allocation5 + $0x10] sm:$0xf]
        %v1431 = vld [vmem:[#allocation5 + $0x14] sm:$0xf]
        %v1432 = vld [vmem:[#allocation5 + $0x18] sm:$0xf]
        %v1433 = vld [vmem:[#allocation5 + $0x1c] sm:$0xf]
        %v1434 = vld [vmem:[#allocation5 + $0x20] sm:$0xf]
        %v1435 = vld [vmem:[#allocation5 + $0x24] sm:$0xf]
        %v1436 = vld [vmem:[#allocation5 + $0x28] sm:$0xf]
        %v1437 = vld [vmem:[#allocation5 + $0x2c] sm:$0xf]
        %v1438 = vld [vmem:[#allocation5 + $0x30] sm:$0xf]
        %v1439 = vld [vmem:[#allocation5 + $0x34] sm:$0xf]
        %v1440 = vld [vmem:[#allocation5 + $0x38] sm:$0xf]
        %v1441 = vld [vmem:[#allocation5 + $0x3c] sm:$0xf]
        %v1442 = vld [vmem:[#allocation5 + $0x40] sm:$0xf]
        %v1443 = vld [vmem:[#allocation5 + $0x44] sm:$0xf]
        %v1444 = vld [vmem:[#allocation5 + $0x48] sm:$0xf]
        %v1445 = vld [vmem:[#allocation5 + $0x4c] sm:$0xf]
        %v1446 = vld [vmem:[#allocation5 + $0x50] sm:$0xf]
        %v1447 = vld [vmem:[#allocation5 + $0x54] sm:$0xf]
        %v1448 = vld [vmem:[#allocation5 + $0x58] sm:$0xf]
        %v1449 = vld [vmem:[#allocation5 + $0x5c] sm:$0xf]
        %v1450 = vld [vmem:[#allocation5 + $0x60] sm:$0xf]
        %v1451 = vld [vmem:[#allocation5 + $0x64] sm:$0xf]
        %v1452 = vld [vmem:[#allocation5 + $0x68] sm:$0xf]
        %v1453 = vld [vmem:[#allocation5 + $0x6c] sm:$0xf]
        %v1454 = vld [vmem:[#allocation5 + $0x70] sm:$0xf]
        %v1455 = vld [vmem:[#allocation5 + $0x74] sm:$0xf]
        %v1456 = vld [vmem:[#allocation5 + $0x78] sm:$0xf]
        %v1457 = vld [vmem:[#allocation5 + $0x7c] sm:$0xf]
        %v1458 = vld [vmem:[%s6] sm:$0x1]
        %v1460 = vperm.slane %v1458, 0
        %v1494 = vunpack.c.l.b16 %v1426
        %v1495 = vunpack.c.l.b16 %v1427
        %v1496 = vunpack.c.l.b16 %v1428
        %v1497 = vunpack.c.l.b16 %v1429
        %v1498 = vunpack.c.l.b16 %v1430
        %v1499 = vunpack.c.l.b16 %v1431
        %v1500 = vunpack.c.l.b16 %v1432
        %v1501 = vunpack.c.l.b16 %v1433
        %v1502 = vunpack.c.l.b16 %v1434
        %v1503 = vunpack.c.l.b16 %v1435
        %v1504 = vunpack.c.l.b16 %v1436
        %v1505 = vunpack.c.l.b16 %v1437
        %v1506 = vunpack.c.l.b16 %v1438
        %v1507 = vunpack.c.l.b16 %v1439
        %v1508 = vunpack.c.l.b16 %v1440
        %v1509 = vunpack.c.l.b16 %v1441
        %v1510 = vunpack.c.l.b16 %v1442
        %v1511 = vunpack.c.l.b16 %v1443
        %v1512 = vunpack.c.l.b16 %v1444
        %v1513 = vunpack.c.l.b16 %v1445
        %v1514 = vunpack.c.l.b16 %v1446
        %v1515 = vunpack.c.l.b16 %v1447
        %v1516 = vunpack.c.l.b16 %v1448
        %v1517 = vunpack.c.l.b16 %v1449
        %v1518 = vunpack.c.l.b16 %v1450
        %v1519 = vunpack.c.l.b16 %v1451
        %v1520 = vunpack.c.l.b16 %v1452
        %v1521 = vunpack.c.l.b16 %v1453
        %v1522 = vunpack.c.l.b16 %v1454
        %v1523 = vunpack.c.l.b16 %v1455
        %v1524 = vunpack.c.l.b16 %v1456
        %v1525 = vunpack.c.l.b16 %v1457
        %v1526 = vpack.c.b16 %v1495, %v1494
        %v1527 = vpack.c.b16 %v1497, %v1496
        %v1528 = vpack.c.b16 %v1499, %v1498
        %v1529 = vpack.c.b16 %v1501, %v1500
        %v1530 = vpack.c.b16 %v1503, %v1502
        %v1531 = vpack.c.b16 %v1505, %v1504
        %v1532 = vpack.c.b16 %v1507, %v1506
        %v1533 = vpack.c.b16 %v1509, %v1508
        %v1534 = vpack.c.b16 %v1511, %v1510
        %v1535 = vpack.c.b16 %v1513, %v1512
        %v1536 = vpack.c.b16 %v1515, %v1514
        %v1537 = vpack.c.b16 %v1517, %v1516
        %v1538 = vpack.c.b16 %v1519, %v1518
        %v1539 = vpack.c.b16 %v1521, %v1520
        %v1540 = vpack.c.b16 %v1523, %v1522
        %v1541 = vpack.c.b16 %v1525, %v1524
        %1558 = vmatpush.bf16.msra.mxu0 %v1533
        %1559 = vmatpush.bf16.msra.mxu0 %v1532
        %1560 = vmatpush.bf16.msra.mxu0 %v1531
        %1561 = vmatpush.bf16.msra.mxu0 %v1530
        %1562 = vmatpush.bf16.msra.mxu0 %v1529
        %1563 = vmatpush.bf16.msra.mxu0 %v1528
        %1564 = vmatpush.bf16.msra.mxu0 %v1527
        %1565 = vmatpush.bf16.msra.mxu0 %v1526
        %1566 = vmatmul.bf16.gmra.mxu0 %v1410
        %v1567 = vpop.f32.mrf.mxu0
        %v1568 = vadd.f32 %v1460, %v1567
        %v1569 = vpop.f32.mrf.mxu0
        %v1570 = vadd.f32 %v1460, %v1569
        %1571 = vmatmul.bf16.gmra.mxu0 %v1412
        %v1572 = vpop.f32.mrf.mxu0
        %v1573 = vadd.f32 %v1460, %v1572
        %v1574 = vpop.f32.mrf.mxu0
        %v1575 = vadd.f32 %v1460, %v1574
        %1576 = vmatmul.bf16.gmra.mxu0 %v1414
        %v1577 = vpop.f32.mrf.mxu0
        %v1578 = vadd.f32 %v1460, %v1577
        %v1579 = vpop.f32.mrf.mxu0
        %v1580 = vadd.f32 %v1460, %v1579
        %1581 = vmatmul.bf16.gmra.mxu0 %v1416
        %v1582 = vpop.f32.mrf.mxu0
        %v1583 = vadd.f32 %v1460, %v1582
        %v1584 = vpop.f32.mrf.mxu0
        %v1585 = vadd.f32 %v1460, %v1584
        %1586 = vmatmul.bf16.gmra.mxu0 %v1418
        %v1587 = vpop.f32.mrf.mxu0
        %v1588 = vadd.f32 %v1460, %v1587
        %v1589 = vpop.f32.mrf.mxu0
        %v1590 = vadd.f32 %v1460, %v1589
        %1591 = vmatmul.bf16.gmra.mxu0 %v1420
        %v1592 = vpop.f32.mrf.mxu0
        %v1593 = vadd.f32 %v1460, %v1592
        %v1594 = vpop.f32.mrf.mxu0
        %v1595 = vadd.f32 %v1460, %v1594
        %1596 = vmatmul.bf16.gmra.mxu0 %v1422
        %v1597 = vpop.f32.mrf.mxu0
        %v1598 = vadd.f32 %v1460, %v1597
        %v1599 = vpop.f32.mrf.mxu0
        %v1600 = vadd.f32 %v1460, %v1599
        %1601 = vmatmul.bf16.gmra.mxu0 %v1424
        %v1602 = vpop.f32.mrf.mxu0
        %v1603 = vadd.f32 %v1460, %v1602
        %v1604 = vpop.f32.mrf.mxu0
        %v1605 = vadd.f32 %v1460, %v1604
        %1606 = vdwg.mxu0
        %1607 = vmatpush.bf16.msra.mxu0 %v1541
        %1608 = vmatpush.bf16.msra.mxu0 %v1540
        %1609 = vmatpush.bf16.msra.mxu0 %v1539
        %1610 = vmatpush.bf16.msra.mxu0 %v1538
        %1611 = vmatpush.bf16.msra.mxu0 %v1537
        %1612 = vmatpush.bf16.msra.mxu0 %v1536
        %1613 = vmatpush.bf16.msra.mxu0 %v1535
        %1614 = vmatpush.bf16.msra.mxu0 %v1534
        %1615 = vmatmul.bf16.gmra.mxu0 %v1411
        %v1616 = vpop.f32.mrf.mxu0
        %v1617 = vadd.f32 %v1568, %v1616
        %v1618 = vpop.f32.mrf.mxu0
        %v1619 = vadd.f32 %v1570, %v1618
        %1620 = vmatmul.bf16.gmra.mxu0 %v1413
        %v1621 = vpop.f32.mrf.mxu0
        %v1622 = vadd.f32 %v1573, %v1621
        %v1623 = vpop.f32.mrf.mxu0
        %v1624 = vadd.f32 %v1575, %v1623
        %1625 = vmatmul.bf16.gmra.mxu0 %v1415
        %v1626 = vpop.f32.mrf.mxu0
        %v1627 = vadd.f32 %v1578, %v1626
        %v1628 = vpop.f32.mrf.mxu0
        %v1629 = vadd.f32 %v1580, %v1628
        %1630 = vmatmul.bf16.gmra.mxu0 %v1417
        %v1631 = vpop.f32.mrf.mxu0
        %v1632 = vadd.f32 %v1583, %v1631
        %v1633 = vpop.f32.mrf.mxu0
        %v1634 = vadd.f32 %v1585, %v1633
        %1635 = vmatmul.bf16.gmra.mxu0 %v1419
        %v1636 = vpop.f32.mrf.mxu0
        %v1637 = vadd.f32 %v1588, %v1636
        %v1638 = vpop.f32.mrf.mxu0
        %v1639 = vadd.f32 %v1590, %v1638
        %1640 = vmatmul.bf16.gmra.mxu0 %v1421
        %v1641 = vpop.f32.mrf.mxu0
        %v1642 = vadd.f32 %v1593, %v1641
        %v1643 = vpop.f32.mrf.mxu0
        %v1644 = vadd.f32 %v1595, %v1643
        %1645 = vmatmul.bf16.gmra.mxu0 %v1423
        %v1646 = vpop.f32.mrf.mxu0
        %v1647 = vadd.f32 %v1598, %v1646
        %v1648 = vpop.f32.mrf.mxu0
        %v1649 = vadd.f32 %v1600, %v1648
        %1650 = vmatmul.bf16.gmra.mxu0 %v1425
        %v1651 = vpop.f32.mrf.mxu0
        %v1652 = vadd.f32 %v1603, %v1651
        %v1653 = vpop.f32.mrf.mxu0
        %v1654 = vadd.f32 %v1605, %v1653
        %1655 = vdwg.mxu0
        %v1656 = vtanh.pop %v1617
        %v1657 = vtanh.pop %v1619
        %v1658 = vtanh.pop %v1622
        %v1659 = vtanh.pop %v1624
        %v1660 = vtanh.pop %v1627
        %v1661 = vtanh.pop %v1629
        %v1662 = vtanh.pop %v1632
        %v1663 = vtanh.pop %v1634
        %v1664 = vtanh.pop %v1637
        %v1665 = vtanh.pop %v1639
        %v1666 = vtanh.pop %v1642
        %v1667 = vtanh.pop %v1644
        %v1668 = vtanh.pop %v1647
        %v1669 = vtanh.pop %v1649
        %v1670 = vtanh.pop %v1652
        %v1671 = vtanh.pop %v1654
        %v1672 = vpack.c.bf16 %v1656, %v1656
        %v1673 = vpack.c.bf16 %v1657, %v1657
        %v1674 = vpack.c.bf16 %v1658, %v1658
        %v1675 = vpack.c.bf16 %v1659, %v1659
        %v1676 = vpack.c.bf16 %v1660, %v1660
        %v1677 = vpack.c.bf16 %v1661, %v1661
        %v1678 = vpack.c.bf16 %v1662, %v1662
        %v1679 = vpack.c.bf16 %v1663, %v1663
        %v1680 = vpack.c.bf16 %v1664, %v1664
        %v1681 = vpack.c.bf16 %v1665, %v1665
        %v1682 = vpack.c.bf16 %v1666, %v1666
        %v1683 = vpack.c.bf16 %v1667, %v1667
        %v1684 = vpack.c.bf16 %v1668, %v1668
        %v1685 = vpack.c.bf16 %v1669, %v1669
        %v1686 = vpack.c.bf16 %v1670, %v1670
        %v1687 = vpack.c.bf16 %v1671, %v1671
        %1688 = vst [vmem:[%s306] sm:$0xf] %v1672
        %1689 = vst [vmem:[%s306 + $0x4] sm:$0xf] %v1673
        %1690 = vst [vmem:[%s306 + $0x8] sm:$0xf] %v1674
        %1691 = vst [vmem:[%s306 + $0xc] sm:$0xf] %v1675
        %1692 = vst [vmem:[%s306 + $0x10] sm:$0xf] %v1676
        %1693 = vst [vmem:[%s306 + $0x14] sm:$0xf] %v1677
        %1694 = vst [vmem:[%s306 + $0x18] sm:$0xf] %v1678
        %1695 = vst [vmem:[%s306 + $0x1c] sm:$0xf] %v1679
        %1696 = vst [vmem:[%s306 + $0x20] sm:$0xf] %v1680
        %1697 = vst [vmem:[%s306 + $0x24] sm:$0xf] %v1681
        %1698 = vst [vmem:[%s306 + $0x28] sm:$0xf] %v1682
        %1699 = vst [vmem:[%s306 + $0x2c] sm:$0xf] %v1683
        %1700 = vst [vmem:[%s306 + $0x30] sm:$0xf] %v1684
        %1701 = vst [vmem:[%s306 + $0x34] sm:$0xf] %v1685
        %1702 = vst [vmem:[%s306 + $0x38] sm:$0xf] %v1686
        %1703 = vst [vmem:[%s306 + $0x3c] sm:$0xf] %v1687
        %s1704 = sand.u32 %s183, 1
        %s1705 = scalar_lea.sflag [#allocation4], %s1704
        %s1706 = sand.u32 %s183, 1
        %s1707 = smul.addr %s1706, 64
        %s1708 = scalar_lea.vmem [#allocation7], %s1707
        // Predicated region
        $region57: #{tpu_custom_call.1} parent=47 // pred_check
          %p1709 = pneg %p193
        $region58: #{tpu_custom_call.1} parent=47 // pred_check_branch
          %1711 = sbr.rel (%p1709) target = $region60
        $region59: #{tpu_custom_call.1} parent=47 // pred_region
          %s1712 = smul.u32 16, %s23
          %1714 = vsyncadd %s1705, 0
          %s1715 = smul.addr %s1712, 4
          %s1716 = scalar_lea.hbm %s7, %s1715
          %s1717 = sshll.u32 %s1708, 4
          %s1718 = int_to_ptr.vmem [resolvable:$true] %s1717
          %s1719 = sshll.u32 %s1716, 4
          %s1720 = int_to_ptr.hbm [resolvable:$true] %s1719
          %1725 = dma.vmem_to_hbm [thread:$0]  %s1718, 1024, %s1720, %s1705, 64, 64, 4
        $region60: #{tpu_custom_call.1} parent=47 // pred_fallthru
          _
      $region48: #{tpu_custom_call.1} parent=5 // pred_fallthru
        _
      %p1726 = scmp.le.s32.totalorder 2, %s18
      // Predicated region
      $region61: #{tpu_custom_call.1} parent=5 // pred_check
        %p1727 = pneg %p1726
      $region62: #{tpu_custom_call.1} parent=5 // pred_check_branch
        %1729 = sbr.rel (%p1727) target = $region64
      $region63: #{tpu_custom_call.1} parent=5 // pred_region
        %s1730 = ssub.s32 %s18, 2
        // Predicated region
        $region65: #{tpu_custom_call.1} parent=63 // pred_check
          %p1731 = pneg %p199
        $region66: #{tpu_custom_call.1} parent=63 // pred_check_branch
          %1733 = sbr.rel (%p1731) target = $region68
        $region67: #{tpu_custom_call.1} parent=63 // pred_region
          %s1734 = sand.u32 %s184, 1
          %s1735 = scalar_lea.sflag [#allocation4], %s1734
          %s1736 = sand.u32 %s184, 1
          %s1737 = smul.addr %s1736, 64
          %s1738 = scalar_lea.vmem [#allocation7], %s1737
          %1740 = dma.done %s1735, 1024
        $region68: #{tpu_custom_call.1} parent=63 // pred_fallthru
          _
      $region64: #{tpu_custom_call.1} parent=5 // pred_fallthru
        _
    $region6: #{tpu_custom_call.1} parent=1 // loop_footer
      %s22 = sadd.s32 1, %s18
    $region7: #{tpu_custom_call.1} parent=1 // loop_footer_branch
      %17 = sbr.rel target = $region3
    $region8: #{tpu_custom_call.1} parent=1 // loop_exit
      _
    %1741 = vsyncpa [#allocation3], 1
    %s1742 = scalar_lea.sflag [#allocation3], 1
    %1743 = vsyncpa %s1742, 1
    %1744 = vsyncpa [#allocation6], 1
    %1745 = vsyncpa [#allocation4], 1
    %s1746 = scalar_lea.sflag [#allocation4], 1
    %1747 = vsyncpa %s1746, 1

</llo_original>
